<compile_context>
chip_gen: v6e
topology: v6e:2x2x1
jax: 0.10.0
libtpu: 0.0.40
codegen_flags: <defaults>
</compile_context>

<pallas_src>
import functools

import jax
import jax.numpy as jnp
from jax import lax
from jax.experimental import pallas as pl
from jax.experimental.pallas import tpu as pltpu


def _layernorm(x, gamma, beta, eps=1e-5):
    mean = jnp.mean(x, axis=-1, keepdims=True)
    var = jnp.mean((x - mean) ** 2, axis=-1, keepdims=True)
    return (x - mean) * lax.rsqrt(var + eps) * gamma + beta


def transformer_block_kernel(
    v_ref, k_ref, q_ref, mask_ref,
    w_fc_ref, b_fc_ref,
    g1_ref, beta1_ref,
    w1_ref, b1_ref, w2_ref, b2_ref,
    g2_ref, beta2_ref,
    out_ref,
    m_sc, l_sc, acc_sc,
    *, heads, head_dim, scale):
    ki = pl.program_id(2)
    nk = pl.num_programs(2)

    # ---- init online-softmax state at the first KV tile of this (batch, q-tile) ----
    @pl.when(ki == 0)
    def _init():
        m_sc[...] = jnp.full(m_sc.shape, -jnp.inf, dtype=m_sc.dtype)
        l_sc[...] = jnp.zeros(l_sc.shape, dtype=l_sc.dtype)
        acc_sc[...] = jnp.zeros(acc_sc.shape, dtype=acc_sc.dtype)

    q_raw = q_ref[0].astype(jnp.float32)           # (TQ, E)  (unscaled; residual needs it)
    qs = q_raw * scale                             # fold 1/sqrt(E) into q once
    k = k_ref[0].astype(jnp.float32)               # (TK, E)
    v = v_ref[0].astype(jnp.float32)               # (TK, E)

    # mask bias hoisted out of the head loop; int8 mask, 0 == masked
    mask_f = mask_ref[0].astype(jnp.float32)       # (TQ, TK)
    mask_bias = jnp.where(mask_f == 0.0,
                          jnp.float32(-1e20 * scale), jnp.float32(0.0))

    # ---- online-softmax attention for this KV tile, all heads ----
    for h in range(heads):
        lo = h * head_dim
        qh = qs[:, lo:lo + head_dim]               # (TQ, hd)
        kh = k[:, lo:lo + head_dim]                # (TK, hd)
        vh = v[:, lo:lo + head_dim]                # (TK, hd)
        # contract qh·khᵀ directly on the MXU (no explicit transpose/relayout)
        s = lax.dot_general(qh, kh, (((1,), (1,)), ((), ())),
                            preferred_element_type=jnp.float32) + mask_bias   # (TQ, TK)

        m_prev = m_sc[h]                                            # (TQ, 1)
        m_new = jnp.maximum(m_prev, jnp.max(s, axis=-1, keepdims=True))
        alpha = jnp.exp(m_prev - m_new)
        p = jnp.exp(s - m_new)
        l_sc[h] = alpha * l_sc[h] + jnp.sum(p, axis=-1, keepdims=True)
        acc_sc[h] = alpha * acc_sc[h] + jnp.dot(p, vh, preferred_element_type=jnp.float32)
        m_sc[h] = m_new

    # ---- finalize: fc_out (fused per head), residual+LN, FF, residual+LN ----
    @pl.when(ki == nk - 1)
    def _finalize():
        w_fc = w_fc_ref[...]                       # (E, E)
        attn_out = None
        for h in range(heads):
            lo = h * head_dim
            head_out = acc_sc[h] * pl.reciprocal(l_sc[h], approx=True)   # (TQ, hd)
            contrib = jnp.dot(head_out, w_fc[lo:lo + head_dim, :],
                              preferred_element_type=jnp.float32)        # (TQ, E)
            attn_out = contrib if attn_out is None else attn_out + contrib
        attn_out = attn_out + b_fc_ref[...]

        # residual + norm1 (dropout == identity in eval)
        x = _layernorm(attn_out + q_raw, g1_ref[...], beta1_ref[...])

        # feed-forward: Linear -> ReLU -> Linear
        h1 = jnp.maximum(
            jnp.dot(x, w1_ref[...], preferred_element_type=jnp.float32) + b1_ref[...],
            0.0)
        ff = jnp.dot(h1, w2_ref[...], preferred_element_type=jnp.float32) + b2_ref[...]

        # residual + norm2 (dropout == identity in eval)
        out = _layernorm(ff + x, g2_ref[...], beta2_ref[...])
        out_ref[0] = out.astype(out_ref.dtype)


def transformer_block(value, key, query, mask, params, heads,
                      *, q_tile=None, kv_tile=None):
    N, S, E = query.shape
    head_dim = E // heads
    hidden = params["w1"].shape[1]

    tq = q_tile or min(S, 256)
    tk = kv_tile or min(S, 256)
    assert S % tq == 0 and S % tk == 0, "seq_len must be divisible by the tile sizes"

    # ship mask as int8 (0 == masked) -> 4x less HBM traffic than f32
    mask_i8 = (mask != 0).astype(jnp.int8)

    kernel = functools.partial(
        transformer_block_kernel,
        heads=heads, head_dim=head_dim, scale=1.0 / (E ** 0.5))

    def wspec(shape):
        # constant index_map: weights DMA'd once, stay resident across the grid
        return pl.BlockSpec(shape, lambda n, qi, ki, _s=shape: tuple(0 for _ in _s))

    grid = (N, S // tq, S // tk)

    return pl.pallas_call(
        kernel,
        out_shape=jax.ShapeDtypeStruct((N, S, E), query.dtype),
        grid=grid,
        in_specs=[
            pl.BlockSpec((1, tk, E), lambda n, qi, ki: (n, ki, 0)),    # value
            pl.BlockSpec((1, tk, E), lambda n, qi, ki: (n, ki, 0)),    # key
            pl.BlockSpec((1, tq, E), lambda n, qi, ki: (n, qi, 0)),    # query
            pl.BlockSpec((1, tq, tk), lambda n, qi, ki: (n, qi, ki)),  # mask (int8)
            wspec((E, E)), wspec((1, E)),                              # fc_out W, b
            wspec((1, E)), wspec((1, E)),                              # norm1 gamma, beta
            wspec((E, hidden)), wspec((1, hidden)),                    # ff W1, b1
            wspec((hidden, E)), wspec((1, E)),                         # ff W2, b2
            wspec((1, E)), wspec((1, E)),                              # norm2 gamma, beta
        ],
        out_specs=pl.BlockSpec((1, tq, E), lambda n, qi, ki: (n, qi, 0)),
        scratch_shapes=[
            pltpu.VMEM((heads, tq, 1), jnp.float32),        # running row max
            pltpu.VMEM((heads, tq, 1), jnp.float32),        # running denominator
            pltpu.VMEM((heads, tq, head_dim), jnp.float32), # running numerator
        ],
        compiler_params=pltpu.CompilerParams(
            dimension_semantics=("parallel", "parallel", "arbitrary")),
    )(value, key, query, mask_i8,
      params["w_fc"], params["b_fc"],
      params["g1"], params["beta1"],
      params["w1"], params["b1"], params["w2"], params["b2"],
      params["g2"], params["beta2"])


def reference_jax(value, key, query, mask, params, heads):
    """Pure-JAX reference mirroring the PyTorch forward (eval mode)."""
    N, S, E = query.shape
    hd = E // heads
    q = query.reshape(N, S, heads, hd)
    k = key.reshape(N, S, heads, hd)
    v = value.reshape(N, S, heads, hd)
    energy = jnp.einsum("nqhd,nkhd->nhqk", q, k)
    energy = jnp.where(mask[:, None] == 0, -1e20, energy)
    attn = jax.nn.softmax(energy / (E ** 0.5), axis=3)
    out = jnp.einsum("nhql,nlhd->nqhd", attn, v).reshape(N, S, E)
    out = out @ params["w_fc"] + params["b_fc"][0]

    def ln(x, g, b):
        m = x.mean(-1, keepdims=True)
        var = ((x - m) ** 2).mean(-1, keepdims=True)
        return (x - m) / jnp.sqrt(var + 1e-5) * g[0] + b[0]

    x = ln(out + query, params["g1"], params["beta1"])
    h = jnp.maximum(x @ params["w1"] + params["b1"][0], 0.0)
    ff = h @ params["w2"] + params["b2"][0]
    return ln(ff + x, params["g2"], params["beta2"])


if __name__ == "__main__":
    # small shapes: batch=2, seq=8, embed=32, heads=4, forward_expansion=4
    N, S, E, heads, fe = 2, 8, 32, 4, 4
    hidden = fe * E

    root = jax.random.PRNGKey(0)
    ks = jax.random.split(root, 12)

    value = jax.random.normal(ks[0], (N, S, E), jnp.float32)
    key = jax.random.normal(ks[1], (N, S, E), jnp.float32)
    query = jax.random.normal(ks[2], (N, S, E), jnp.float32)
    # binary mask with some zeros (0 -> masked)
    mask = (jax.random.uniform(ks[3], (N, S, S)) > 0.2).astype(jnp.float32)

    params = {
        "w_fc": 0.1 * jax.random.normal(ks[4], (E, E), jnp.float32),
        "b_fc": 0.1 * jax.random.normal(ks[5], (1, E), jnp.float32),
        "g1": jnp.ones((1, E), jnp.float32),
        "beta1": jnp.zeros((1, E), jnp.float32),
        "w1": 0.1 * jax.random.normal(ks[6], (E, hidden), jnp.float32),
        "b1": 0.1 * jax.random.normal(ks[7], (1, hidden), jnp.float32),
        "w2": 0.1 * jax.random.normal(ks[8], (hidden, E), jnp.float32),
        "b2": 0.1 * jax.random.normal(ks[9], (1, E), jnp.float32),
        "g2": jnp.ones((1, E), jnp.float32),
        "beta2": jnp.zeros((1, E), jnp.float32),
    }

    out = transformer_block(value, key, query, mask, params, heads)
    out = jax.block_until_ready(out)

    ref = reference_jax(value, key, query, mask, params, heads)
    assert out.shape == (N, S, E)
    # approx=True softmax reciprocal loosens the tolerance slightly vs. the f32 reference
    assert jnp.allclose(out, ref, atol=1e-2, rtol=1e-2), "mismatch vs JAX reference"

    print("KERNEL_OK")
</pallas_src>

<mosaic_0001>
module attributes {stable_mosaic.version = 11 : i64} {
  func.func @transformer_block_kernel(%arg0: i32, %arg1: i32, %arg2: i32, %arg3: memref<1x8x32xf32, #tpu.memory_space<vmem>>, %arg4: memref<1x8x32xf32, #tpu.memory_space<vmem>>, %arg5: memref<1x8x32xf32, #tpu.memory_space<vmem>>, %arg6: memref<1x8x8xi8, #tpu.memory_space<vmem>>, %arg7: memref<32x32xf32, #tpu.memory_space<vmem>>, %arg8: memref<1x32xf32, #tpu.memory_space<vmem>>, %arg9: memref<1x32xf32, #tpu.memory_space<vmem>>, %arg10: memref<1x32xf32, #tpu.memory_space<vmem>>, %arg11: memref<32x128xf32, #tpu.memory_space<vmem>>, %arg12: memref<1x128xf32, #tpu.memory_space<vmem>>, %arg13: memref<128x32xf32, #tpu.memory_space<vmem>>, %arg14: memref<1x32xf32, #tpu.memory_space<vmem>>, %arg15: memref<1x32xf32, #tpu.memory_space<vmem>>, %arg16: memref<1x32xf32, #tpu.memory_space<vmem>>, %arg17: memref<1x8x32xf32, #tpu.memory_space<vmem>>, %arg18: memref<4x8x1xf32, #tpu.memory_space<vmem>>, %arg19: memref<4x8x1xf32, #tpu.memory_space<vmem>>, %arg20: memref<4x8x8xf32, #tpu.memory_space<vmem>>) attributes {dimension_semantics = [#tpu.dimension_semantics<parallel>, #tpu.dimension_semantics<parallel>, #tpu.dimension_semantics<arbitrary>], iteration_bounds = array<i64: 2, 1, 1>, scalar_prefetch = 0 : i64, scratch_operands = 3 : i64, tpu.core_type = #tpu.core_type<tc>, window_params = [{transform_indices = @transform_0, window_bounds = array<i64: 1, 8, 32>}, {transform_indices = @transform_1, window_bounds = array<i64: 1, 8, 32>}, {transform_indices = @transform_2, window_bounds = array<i64: 1, 8, 32>}, {transform_indices = @transform_3, window_bounds = array<i64: 1, 8, 8>}, {pipeline_mode = #tpu.pipeline_mode<synchronous>, transform_indices = @transform_4, window_bounds = array<i64: 32, 32>}, {pipeline_mode = #tpu.pipeline_mode<synchronous>, transform_indices = @transform_5, window_bounds = array<i64: 1, 32>}, {pipeline_mode = #tpu.pipeline_mode<synchronous>, transform_indices = @transform_6, window_bounds = array<i64: 1, 32>}, {pipeline_mode = #tpu.pipeline_mode<synchronous>, transform_indices = @transform_7, window_bounds = array<i64: 1, 32>}, {pipeline_mode = #tpu.pipeline_mode<synchronous>, transform_indices = @transform_8, window_bounds = array<i64: 32, 128>}, {pipeline_mode = #tpu.pipeline_mode<synchronous>, transform_indices = @transform_9, window_bounds = array<i64: 1, 128>}, {pipeline_mode = #tpu.pipeline_mode<synchronous>, transform_indices = @transform_10, window_bounds = array<i64: 128, 32>}, {pipeline_mode = #tpu.pipeline_mode<synchronous>, transform_indices = @transform_11, window_bounds = array<i64: 1, 32>}, {pipeline_mode = #tpu.pipeline_mode<synchronous>, transform_indices = @transform_12, window_bounds = array<i64: 1, 32>}, {pipeline_mode = #tpu.pipeline_mode<synchronous>, transform_indices = @transform_13, window_bounds = array<i64: 1, 32>}, {transform_indices = @transform_14, window_bounds = array<i64: 1, 8, 32>}]} {
    %c0_i32 = arith.constant 0 : i32
    %0 = arith.cmpi eq, %arg2, %c0_i32 : i32
    %1 = arith.extui %0 : i1 to i32
    %c0_i32_0 = arith.constant 0 : i32
    %2 = arith.cmpi ne, %1, %c0_i32_0 : i32
    scf.if %2 {
      %cst_102 = arith.constant 0xFF800000 : f32
      %166 = vector.broadcast %cst_102 : f32 to vector<4x8x1xf32>
      %c0_103 = arith.constant 0 : index
      %c0_104 = arith.constant 0 : index
      %c0_105 = arith.constant 0 : index
      %167 = vector.load %arg18[%c0_103, %c0_104, %c0_105] : memref<4x8x1xf32, #tpu.memory_space<vmem>>, vector<4x8x1xf32>
      tpu.vector_store %arg18[%c0_103, %c0_104, %c0_105], %166 {strides = array<i32>} : memref<4x8x1xf32, #tpu.memory_space<vmem>>, vector<4x8x1xf32>,
      %cst_106 = arith.constant 0.000000e+00 : f32
      %168 = vector.broadcast %cst_106 : f32 to vector<4x8x1xf32>
      %c0_107 = arith.constant 0 : index
      %c0_108 = arith.constant 0 : index
      %c0_109 = arith.constant 0 : index
      %169 = vector.load %arg19[%c0_107, %c0_108, %c0_109] : memref<4x8x1xf32, #tpu.memory_space<vmem>>, vector<4x8x1xf32>
      tpu.vector_store %arg19[%c0_107, %c0_108, %c0_109], %168 {strides = array<i32>} : memref<4x8x1xf32, #tpu.memory_space<vmem>>, vector<4x8x1xf32>,
      %cst_110 = arith.constant 0.000000e+00 : f32
      %170 = vector.broadcast %cst_110 : f32 to vector<4x8x8xf32>
      %c0_111 = arith.constant 0 : index
      %c0_112 = arith.constant 0 : index
      %c0_113 = arith.constant 0 : index
      %171 = vector.load %arg20[%c0_111, %c0_112, %c0_113] : memref<4x8x8xf32, #tpu.memory_space<vmem>>, vector<4x8x8xf32>
      tpu.vector_store %arg20[%c0_111, %c0_112, %c0_113], %170 {strides = array<i32>} : memref<4x8x8xf32, #tpu.memory_space<vmem>>, vector<4x8x8xf32>,
    } else {
    }
    %c0 = arith.constant 0 : index
    %c0_1 = arith.constant 0 : index
    %c0_2 = arith.constant 0 : index
    %3 = vector.load %arg5[%c0, %c0_1, %c0_2] : memref<1x8x32xf32, #tpu.memory_space<vmem>>, vector<1x8x32xf32>
    %4 = vector.shape_cast %3 : vector<1x8x32xf32> to vector<8x32xf32>
    %cst = arith.constant 0.176776692 : f32
    %5 = vector.broadcast %cst : f32 to vector<8x32xf32>
    %6 = arith.mulf %4, %5 : vector<8x32xf32>
    %c0_3 = arith.constant 0 : index
    %c0_4 = arith.constant 0 : index
    %c0_5 = arith.constant 0 : index
    %7 = vector.load %arg4[%c0_3, %c0_4, %c0_5] : memref<1x8x32xf32, #tpu.memory_space<vmem>>, vector<1x8x32xf32>
    %8 = vector.shape_cast %7 : vector<1x8x32xf32> to vector<8x32xf32>
    %c0_6 = arith.constant 0 : index
    %c0_7 = arith.constant 0 : index
    %c0_8 = arith.constant 0 : index
    %9 = vector.load %arg3[%c0_6, %c0_7, %c0_8] : memref<1x8x32xf32, #tpu.memory_space<vmem>>, vector<1x8x32xf32>
    %10 = vector.shape_cast %9 : vector<1x8x32xf32> to vector<8x32xf32>
    %c0_9 = arith.constant 0 : index
    %c0_10 = arith.constant 0 : index
    %c0_11 = arith.constant 0 : index
    %11 = vector.load %arg6[%c0_9, %c0_10, %c0_11] : memref<1x8x8xi8, #tpu.memory_space<vmem>>, vector<1x8x8xi8>
    %12 = vector.shape_cast %11 : vector<1x8x8xi8> to vector<8x8xi8>
    %13 = arith.sitofp %12 : vector<8x8xi8> to vector<8x8xf32>
    %cst_12 = arith.constant 0.000000e+00 : f32
    %14 = vector.broadcast %cst_12 : f32 to vector<8x8xf32>
    %15 = arith.cmpf oeq, %13, %14 : vector<8x8xf32>
    %cst_13 = arith.constant -1.76776698E+19 : f32
    %cst_14 = arith.constant 0.000000e+00 : f32
    %16 = vector.broadcast %cst_13 : f32 to vector<8x8xf32>
    %17 = vector.broadcast %cst_14 : f32 to vector<8x8xf32>
    %18 = arith.select %15, %16, %17 : vector<8x8xi1>, vector<8x8xf32>
    %19 = vector.extract_strided_slice %6 {offsets = [0, 0], sizes = [8, 8], strides = [1, 1]} : vector<8x32xf32> to vector<8x8xf32>
    %20 = vector.extract_strided_slice %8 {offsets = [0, 0], sizes = [8, 8], strides = [1, 1]} : vector<8x32xf32> to vector<8x8xf32>
    %21 = vector.extract_strided_slice %10 {offsets = [0, 0], sizes = [8, 8], strides = [1, 1]} : vector<8x32xf32> to vector<8x8xf32>
    %cst_15 = arith.constant dense<0.000000e+00> : vector<8x8xf32>
    %22 = tpu.matmul %19, %20, %cst_15 {dimension_numbers = #tpu.dot_dimension_numbers<[1], [1], [0], [0], [0, 0, 1, 0], [], []>} : vector<8x8xf32>, vector<8x8xf32>, vector<8x8xf32> -> vector<8x8xf32>
    %23 = arith.addf %22, %18 : vector<8x8xf32>
    %c0_16 = arith.constant 0 : index
    %c0_17 = arith.constant 0 : index
    %c0_18 = arith.constant 0 : index
    %24 = vector.load %arg18[%c0_16, %c0_17, %c0_18] : memref<4x8x1xf32, #tpu.memory_space<vmem>>, vector<1x8x1xf32>
    %25 = vector.shape_cast %24 : vector<1x8x1xf32> to vector<8x1xf32>
    %cst_19 = arith.constant dense<0xFF800000> : vector<8xf32>
    %26 = vector.multi_reduction <maximumf>, %23, %cst_19 [1] : vector<8x8xf32> to vector<8xf32>
    %27 = vector.shape_cast %26 : vector<8xf32> to vector<8x1xf32>
    %28 = arith.maximumf %25, %27 : vector<8x1xf32>
    %29 = arith.subf %25, %28 : vector<8x1xf32>
    %30 = math.exp %29 : vector<8x1xf32>
    %31 = vector.broadcast %28 : vector<8x1xf32> to vector<8x8xf32>
    %32 = arith.subf %23, %31 : vector<8x8xf32>
    %33 = math.exp %32 : vector<8x8xf32>
    %c0_20 = arith.constant 0 : index
    %c0_21 = arith.constant 0 : index
    %c0_22 = arith.constant 0 : index
    %34 = vector.load %arg19[%c0_20, %c0_21, %c0_22] : memref<4x8x1xf32, #tpu.memory_space<vmem>>, vector<1x8x1xf32>
    %35 = vector.shape_cast %34 : vector<1x8x1xf32> to vector<8x1xf32>
    %36 = arith.mulf %30, %35 : vector<8x1xf32>
    %cst_23 = arith.constant dense<0.000000e+00> : vector<8xf32>
    %37 = vector.multi_reduction <add>, %33, %cst_23 [1] : vector<8x8xf32> to vector<8xf32>
    %38 = vector.shape_cast %37 : vector<8xf32> to vector<8x1xf32>
    %39 = arith.addf %36, %38 : vector<8x1xf32>
    %c0_24 = arith.constant 0 : index
    %c0_25 = arith.constant 0 : index
    %c0_26 = arith.constant 0 : index
    %40 = vector.load %arg19[%c0_24, %c0_25, %c0_26] : memref<4x8x1xf32, #tpu.memory_space<vmem>>, vector<1x8x1xf32>
    %41 = vector.shape_cast %40 : vector<1x8x1xf32> to vector<8x1xf32>
    %42 = vector.shape_cast %39 : vector<8x1xf32> to vector<1x8x1xf32>
    tpu.vector_store %arg19[%c0_24, %c0_25, %c0_26], %42 {strides = array<i32>} : memref<4x8x1xf32, #tpu.memory_space<vmem>>, vector<1x8x1xf32>,
    %c0_27 = arith.constant 0 : index
    %c0_28 = arith.constant 0 : index
    %c0_29 = arith.constant 0 : index
    %43 = vector.load %arg20[%c0_27, %c0_28, %c0_29] : memref<4x8x8xf32, #tpu.memory_space<vmem>>, vector<1x8x8xf32>
    %44 = vector.shape_cast %43 : vector<1x8x8xf32> to vector<8x8xf32>
    %45 = vector.broadcast %30 : vector<8x1xf32> to vector<8x8xf32>
    %46 = arith.mulf %45, %44 : vector<8x8xf32>
    %cst_30 = arith.constant dense<0.000000e+00> : vector<8x8xf32>
    %47 = tpu.matmul %33, %21, %cst_30 {dimension_numbers = #tpu.dot_dimension_numbers<[1], [0], [0], [1], [0, 0, 1, 1], [], []>} : vector<8x8xf32>, vector<8x8xf32>, vector<8x8xf32> -> vector<8x8xf32>
    %48 = arith.addf %46, %47 : vector<8x8xf32>
    %c0_31 = arith.constant 0 : index
    %c0_32 = arith.constant 0 : index
    %c0_33 = arith.constant 0 : index
    %49 = vector.load %arg20[%c0_31, %c0_32, %c0_33] : memref<4x8x8xf32, #tpu.memory_space<vmem>>, vector<1x8x8xf32>
    %50 = vector.shape_cast %49 : vector<1x8x8xf32> to vector<8x8xf32>
    %51 = vector.shape_cast %48 : vector<8x8xf32> to vector<1x8x8xf32>
    tpu.vector_store %arg20[%c0_31, %c0_32, %c0_33], %51 {strides = array<i32>} : memref<4x8x8xf32, #tpu.memory_space<vmem>>, vector<1x8x8xf32>,
    %c0_34 = arith.constant 0 : index
    %c0_35 = arith.constant 0 : index
    %c0_36 = arith.constant 0 : index
    %52 = vector.load %arg18[%c0_34, %c0_35, %c0_36] : memref<4x8x1xf32, #tpu.memory_space<vmem>>, vector<1x8x1xf32>
    %53 = vector.shape_cast %52 : vector<1x8x1xf32> to vector<8x1xf32>
    %54 = vector.shape_cast %28 : vector<8x1xf32> to vector<1x8x1xf32>
    tpu.vector_store %arg18[%c0_34, %c0_35, %c0_36], %54 {strides = array<i32>} : memref<4x8x1xf32, #tpu.memory_space<vmem>>, vector<1x8x1xf32>,
    %55 = vector.extract_strided_slice %6 {offsets = [0, 8], sizes = [8, 8], strides = [1, 1]} : vector<8x32xf32> to vector<8x8xf32>
    %56 = vector.extract_strided_slice %8 {offsets = [0, 8], sizes = [8, 8], strides = [1, 1]} : vector<8x32xf32> to vector<8x8xf32>
    %57 = vector.extract_strided_slice %10 {offsets = [0, 8], sizes = [8, 8], strides = [1, 1]} : vector<8x32xf32> to vector<8x8xf32>
    %cst_37 = arith.constant dense<0.000000e+00> : vector<8x8xf32>
    %58 = tpu.matmul %55, %56, %cst_37 {dimension_numbers = #tpu.dot_dimension_numbers<[1], [1], [0], [0], [0, 0, 1, 0], [], []>} : vector<8x8xf32>, vector<8x8xf32>, vector<8x8xf32> -> vector<8x8xf32>
    %59 = arith.addf %58, %18 : vector<8x8xf32>
    %c1 = arith.constant 1 : index
    %c0_38 = arith.constant 0 : index
    %c0_39 = arith.constant 0 : index
    %60 = vector.load %arg18[%c1, %c0_38, %c0_39] : memref<4x8x1xf32, #tpu.memory_space<vmem>>, vector<1x8x1xf32>
    %61 = vector.shape_cast %60 : vector<1x8x1xf32> to vector<8x1xf32>
    %cst_40 = arith.constant dense<0xFF800000> : vector<8xf32>
    %62 = vector.multi_reduction <maximumf>, %59, %cst_40 [1] : vector<8x8xf32> to vector<8xf32>
    %63 = vector.shape_cast %62 : vector<8xf32> to vector<8x1xf32>
    %64 = arith.maximumf %61, %63 : vector<8x1xf32>
    %65 = arith.subf %61, %64 : vector<8x1xf32>
    %66 = math.exp %65 : vector<8x1xf32>
    %67 = vector.broadcast %64 : vector<8x1xf32> to vector<8x8xf32>
    %68 = arith.subf %59, %67 : vector<8x8xf32>
    %69 = math.exp %68 : vector<8x8xf32>
    %c1_41 = arith.constant 1 : index
    %c0_42 = arith.constant 0 : index
    %c0_43 = arith.constant 0 : index
    %70 = vector.load %arg19[%c1_41, %c0_42, %c0_43] : memref<4x8x1xf32, #tpu.memory_space<vmem>>, vector<1x8x1xf32>
    %71 = vector.shape_cast %70 : vector<1x8x1xf32> to vector<8x1xf32>
    %72 = arith.mulf %66, %71 : vector<8x1xf32>
    %cst_44 = arith.constant dense<0.000000e+00> : vector<8xf32>
    %73 = vector.multi_reduction <add>, %69, %cst_44 [1] : vector<8x8xf32> to vector<8xf32>
    %74 = vector.shape_cast %73 : vector<8xf32> to vector<8x1xf32>
    %75 = arith.addf %72, %74 : vector<8x1xf32>
    %c1_45 = arith.constant 1 : index
    %c0_46 = arith.constant 0 : index
    %c0_47 = arith.constant 0 : index
    %76 = vector.load %arg19[%c1_45, %c0_46, %c0_47] : memref<4x8x1xf32, #tpu.memory_space<vmem>>, vector<1x8x1xf32>
    %77 = vector.shape_cast %76 : vector<1x8x1xf32> to vector<8x1xf32>
    %78 = vector.shape_cast %75 : vector<8x1xf32> to vector<1x8x1xf32>
    tpu.vector_store %arg19[%c1_45, %c0_46, %c0_47], %78 {strides = array<i32>} : memref<4x8x1xf32, #tpu.memory_space<vmem>>, vector<1x8x1xf32>,
    %c1_48 = arith.constant 1 : index
    %c0_49 = arith.constant 0 : index
    %c0_50 = arith.constant 0 : index
    %79 = vector.load %arg20[%c1_48, %c0_49, %c0_50] : memref<4x8x8xf32, #tpu.memory_space<vmem>>, vector<1x8x8xf32>
    %80 = vector.shape_cast %79 : vector<1x8x8xf32> to vector<8x8xf32>
    %81 = vector.broadcast %66 : vector<8x1xf32> to vector<8x8xf32>
    %82 = arith.mulf %81, %80 : vector<8x8xf32>
    %cst_51 = arith.constant dense<0.000000e+00> : vector<8x8xf32>
    %83 = tpu.matmul %69, %57, %cst_51 {dimension_numbers = #tpu.dot_dimension_numbers<[1], [0], [0], [1], [0, 0, 1, 1], [], []>} : vector<8x8xf32>, vector<8x8xf32>, vector<8x8xf32> -> vector<8x8xf32>
    %84 = arith.addf %82, %83 : vector<8x8xf32>
    %c1_52 = arith.constant 1 : index
    %c0_53 = arith.constant 0 : index
    %c0_54 = arith.constant 0 : index
    %85 = vector.load %arg20[%c1_52, %c0_53, %c0_54] : memref<4x8x8xf32, #tpu.memory_space<vmem>>, vector<1x8x8xf32>
    %86 = vector.shape_cast %85 : vector<1x8x8xf32> to vector<8x8xf32>
    %87 = vector.shape_cast %84 : vector<8x8xf32> to vector<1x8x8xf32>
    tpu.vector_store %arg20[%c1_52, %c0_53, %c0_54], %87 {strides = array<i32>} : memref<4x8x8xf32, #tpu.memory_space<vmem>>, vector<1x8x8xf32>,
    %c1_55 = arith.constant 1 : index
    %c0_56 = arith.constant 0 : index
    %c0_57 = arith.constant 0 : index
    %88 = vector.load %arg18[%c1_55, %c0_56, %c0_57] : memref<4x8x1xf32, #tpu.memory_space<vmem>>, vector<1x8x1xf32>
    %89 = vector.shape_cast %88 : vector<1x8x1xf32> to vector<8x1xf32>
    %90 = vector.shape_cast %64 : vector<8x1xf32> to vector<1x8x1xf32>
    tpu.vector_store %arg18[%c1_55, %c0_56, %c0_57], %90 {strides = array<i32>} : memref<4x8x1xf32, #tpu.memory_space<vmem>>, vector<1x8x1xf32>,
    %91 = vector.extract_strided_slice %6 {offsets = [0, 16], sizes = [8, 8], strides = [1, 1]} : vector<8x32xf32> to vector<8x8xf32>
    %92 = vector.extract_strided_slice %8 {offsets = [0, 16], sizes = [8, 8], strides = [1, 1]} : vector<8x32xf32> to vector<8x8xf32>
    %93 = vector.extract_strided_slice %10 {offsets = [0, 16], sizes = [8, 8], strides = [1, 1]} : vector<8x32xf32> to vector<8x8xf32>
    %cst_58 = arith.constant dense<0.000000e+00> : vector<8x8xf32>
    %94 = tpu.matmul %91, %92, %cst_58 {dimension_numbers = #tpu.dot_dimension_numbers<[1], [1], [0], [0], [0, 0, 1, 0], [], []>} : vector<8x8xf32>, vector<8x8xf32>, vector<8x8xf32> -> vector<8x8xf32>
    %95 = arith.addf %94, %18 : vector<8x8xf32>
    %c2 = arith.constant 2 : index
    %c0_59 = arith.constant 0 : index
    %c0_60 = arith.constant 0 : index
    %96 = vector.load %arg18[%c2, %c0_59, %c0_60] : memref<4x8x1xf32, #tpu.memory_space<vmem>>, vector<1x8x1xf32>
    %97 = vector.shape_cast %96 : vector<1x8x1xf32> to vector<8x1xf32>
    %cst_61 = arith.constant dense<0xFF800000> : vector<8xf32>
    %98 = vector.multi_reduction <maximumf>, %95, %cst_61 [1] : vector<8x8xf32> to vector<8xf32>
    %99 = vector.shape_cast %98 : vector<8xf32> to vector<8x1xf32>
    %100 = arith.maximumf %97, %99 : vector<8x1xf32>
    %101 = arith.subf %97, %100 : vector<8x1xf32>
    %102 = math.exp %101 : vector<8x1xf32>
    %103 = vector.broadcast %100 : vector<8x1xf32> to vector<8x8xf32>
    %104 = arith.subf %95, %103 : vector<8x8xf32>
    %105 = math.exp %104 : vector<8x8xf32>
    %c2_62 = arith.constant 2 : index
    %c0_63 = arith.constant 0 : index
    %c0_64 = arith.constant 0 : index
    %106 = vector.load %arg19[%c2_62, %c0_63, %c0_64] : memref<4x8x1xf32, #tpu.memory_space<vmem>>, vector<1x8x1xf32>
    %107 = vector.shape_cast %106 : vector<1x8x1xf32> to vector<8x1xf32>
    %108 = arith.mulf %102, %107 : vector<8x1xf32>
    %cst_65 = arith.constant dense<0.000000e+00> : vector<8xf32>
    %109 = vector.multi_reduction <add>, %105, %cst_65 [1] : vector<8x8xf32> to vector<8xf32>
    %110 = vector.shape_cast %109 : vector<8xf32> to vector<8x1xf32>
    %111 = arith.addf %108, %110 : vector<8x1xf32>
    %c2_66 = arith.constant 2 : index
    %c0_67 = arith.constant 0 : index
    %c0_68 = arith.constant 0 : index
    %112 = vector.load %arg19[%c2_66, %c0_67, %c0_68] : memref<4x8x1xf32, #tpu.memory_space<vmem>>, vector<1x8x1xf32>
    %113 = vector.shape_cast %112 : vector<1x8x1xf32> to vector<8x1xf32>
    %114 = vector.shape_cast %111 : vector<8x1xf32> to vector<1x8x1xf32>
    tpu.vector_store %arg19[%c2_66, %c0_67, %c0_68], %114 {strides = array<i32>} : memref<4x8x1xf32, #tpu.memory_space<vmem>>, vector<1x8x1xf32>,
    %c2_69 = arith.constant 2 : index
    %c0_70 = arith.constant 0 : index
    %c0_71 = arith.constant 0 : index
    %115 = vector.load %arg20[%c2_69, %c0_70, %c0_71] : memref<4x8x8xf32, #tpu.memory_space<vmem>>, vector<1x8x8xf32>
    %116 = vector.shape_cast %115 : vector<1x8x8xf32> to vector<8x8xf32>
    %117 = vector.broadcast %102 : vector<8x1xf32> to vector<8x8xf32>
    %118 = arith.mulf %117, %116 : vector<8x8xf32>
    %cst_72 = arith.constant dense<0.000000e+00> : vector<8x8xf32>
    %119 = tpu.matmul %105, %93, %cst_72 {dimension_numbers = #tpu.dot_dimension_numbers<[1], [0], [0], [1], [0, 0, 1, 1], [], []>} : vector<8x8xf32>, vector<8x8xf32>, vector<8x8xf32> -> vector<8x8xf32>
    %120 = arith.addf %118, %119 : vector<8x8xf32>
    %c2_73 = arith.constant 2 : index
    %c0_74 = arith.constant 0 : index
    %c0_75 = arith.constant 0 : index
    %121 = vector.load %arg20[%c2_73, %c0_74, %c0_75] : memref<4x8x8xf32, #tpu.memory_space<vmem>>, vector<1x8x8xf32>
    %122 = vector.shape_cast %121 : vector<1x8x8xf32> to vector<8x8xf32>
    %123 = vector.shape_cast %120 : vector<8x8xf32> to vector<1x8x8xf32>
    tpu.vector_store %arg20[%c2_73, %c0_74, %c0_75], %123 {strides = array<i32>} : memref<4x8x8xf32, #tpu.memory_space<vmem>>, vector<1x8x8xf32>,
    %c2_76 = arith.constant 2 : index
    %c0_77 = arith.constant 0 : index
    %c0_78 = arith.constant 0 : index
    %124 = vector.load %arg18[%c2_76, %c0_77, %c0_78] : memref<4x8x1xf32, #tpu.memory_space<vmem>>, vector<1x8x1xf32>
    %125 = vector.shape_cast %124 : vector<1x8x1xf32> to vector<8x1xf32>
    %126 = vector.shape_cast %100 : vector<8x1xf32> to vector<1x8x1xf32>
    tpu.vector_store %arg18[%c2_76, %c0_77, %c0_78], %126 {strides = array<i32>} : memref<4x8x1xf32, #tpu.memory_space<vmem>>, vector<1x8x1xf32>,
    %127 = vector.extract_strided_slice %6 {offsets = [0, 24], sizes = [8, 8], strides = [1, 1]} : vector<8x32xf32> to vector<8x8xf32>
    %128 = vector.extract_strided_slice %8 {offsets = [0, 24], sizes = [8, 8], strides = [1, 1]} : vector<8x32xf32> to vector<8x8xf32>
    %129 = vector.extract_strided_slice %10 {offsets = [0, 24], sizes = [8, 8], strides = [1, 1]} : vector<8x32xf32> to vector<8x8xf32>
    %cst_79 = arith.constant dense<0.000000e+00> : vector<8x8xf32>
    %130 = tpu.matmul %127, %128, %cst_79 {dimension_numbers = #tpu.dot_dimension_numbers<[1], [1], [0], [0], [0, 0, 1, 0], [], []>} : vector<8x8xf32>, vector<8x8xf32>, vector<8x8xf32> -> vector<8x8xf32>
    %131 = arith.addf %130, %18 : vector<8x8xf32>
    %c3 = arith.constant 3 : index
    %c0_80 = arith.constant 0 : index
    %c0_81 = arith.constant 0 : index
    %132 = vector.load %arg18[%c3, %c0_80, %c0_81] : memref<4x8x1xf32, #tpu.memory_space<vmem>>, vector<1x8x1xf32>
    %133 = vector.shape_cast %132 : vector<1x8x1xf32> to vector<8x1xf32>
    %cst_82 = arith.constant dense<0xFF800000> : vector<8xf32>
    %134 = vector.multi_reduction <maximumf>, %131, %cst_82 [1] : vector<8x8xf32> to vector<8xf32>
    %135 = vector.shape_cast %134 : vector<8xf32> to vector<8x1xf32>
    %136 = arith.maximumf %133, %135 : vector<8x1xf32>
    %137 = arith.subf %133, %136 : vector<8x1xf32>
    %138 = math.exp %137 : vector<8x1xf32>
    %139 = vector.broadcast %136 : vector<8x1xf32> to vector<8x8xf32>
    %140 = arith.subf %131, %139 : vector<8x8xf32>
    %141 = math.exp %140 : vector<8x8xf32>
    %c3_83 = arith.constant 3 : index
    %c0_84 = arith.constant 0 : index
    %c0_85 = arith.constant 0 : index
    %142 = vector.load %arg19[%c3_83, %c0_84, %c0_85] : memref<4x8x1xf32, #tpu.memory_space<vmem>>, vector<1x8x1xf32>
    %143 = vector.shape_cast %142 : vector<1x8x1xf32> to vector<8x1xf32>
    %144 = arith.mulf %138, %143 : vector<8x1xf32>
    %cst_86 = arith.constant dense<0.000000e+00> : vector<8xf32>
    %145 = vector.multi_reduction <add>, %141, %cst_86 [1] : vector<8x8xf32> to vector<8xf32>
    %146 = vector.shape_cast %145 : vector<8xf32> to vector<8x1xf32>
    %147 = arith.addf %144, %146 : vector<8x1xf32>
    %c3_87 = arith.constant 3 : index
    %c0_88 = arith.constant 0 : index
    %c0_89 = arith.constant 0 : index
    %148 = vector.load %arg19[%c3_87, %c0_88, %c0_89] : memref<4x8x1xf32, #tpu.memory_space<vmem>>, vector<1x8x1xf32>
    %149 = vector.shape_cast %148 : vector<1x8x1xf32> to vector<8x1xf32>
    %150 = vector.shape_cast %147 : vector<8x1xf32> to vector<1x8x1xf32>
    tpu.vector_store %arg19[%c3_87, %c0_88, %c0_89], %150 {strides = array<i32>} : memref<4x8x1xf32, #tpu.memory_space<vmem>>, vector<1x8x1xf32>,
    %c3_90 = arith.constant 3 : index
    %c0_91 = arith.constant 0 : index
    %c0_92 = arith.constant 0 : index
    %151 = vector.load %arg20[%c3_90, %c0_91, %c0_92] : memref<4x8x8xf32, #tpu.memory_space<vmem>>, vector<1x8x8xf32>
    %152 = vector.shape_cast %151 : vector<1x8x8xf32> to vector<8x8xf32>
    %153 = vector.broadcast %138 : vector<8x1xf32> to vector<8x8xf32>
    %154 = arith.mulf %153, %152 : vector<8x8xf32>
    %cst_93 = arith.constant dense<0.000000e+00> : vector<8x8xf32>
    %155 = tpu.matmul %141, %129, %cst_93 {dimension_numbers = #tpu.dot_dimension_numbers<[1], [0], [0], [1], [0, 0, 1, 1], [], []>} : vector<8x8xf32>, vector<8x8xf32>, vector<8x8xf32> -> vector<8x8xf32>
    %156 = arith.addf %154, %155 : vector<8x8xf32>
    %c3_94 = arith.constant 3 : index
    %c0_95 = arith.constant 0 : index
    %c0_96 = arith.constant 0 : index
    %157 = vector.load %arg20[%c3_94, %c0_95, %c0_96] : memref<4x8x8xf32, #tpu.memory_space<vmem>>, vector<1x8x8xf32>
    %158 = vector.shape_cast %157 : vector<1x8x8xf32> to vector<8x8xf32>
    %159 = vector.shape_cast %156 : vector<8x8xf32> to vector<1x8x8xf32>
    tpu.vector_store %arg20[%c3_94, %c0_95, %c0_96], %159 {strides = array<i32>} : memref<4x8x8xf32, #tpu.memory_space<vmem>>, vector<1x8x8xf32>,
    %c3_97 = arith.constant 3 : index
    %c0_98 = arith.constant 0 : index
    %c0_99 = arith.constant 0 : index
    %160 = vector.load %arg18[%c3_97, %c0_98, %c0_99] : memref<4x8x1xf32, #tpu.memory_space<vmem>>, vector<1x8x1xf32>
    %161 = vector.shape_cast %160 : vector<1x8x1xf32> to vector<8x1xf32>
    %162 = vector.shape_cast %136 : vector<8x1xf32> to vector<1x8x1xf32>
    tpu.vector_store %arg18[%c3_97, %c0_98, %c0_99], %162 {strides = array<i32>} : memref<4x8x1xf32, #tpu.memory_space<vmem>>, vector<1x8x1xf32>,
    %c0_i32_100 = arith.constant 0 : i32
    %163 = arith.cmpi eq, %arg2, %c0_i32_100 : i32
    %164 = arith.extui %163 : i1 to i32
    %c0_i32_101 = arith.constant 0 : i32
    %165 = arith.cmpi ne, %164, %c0_i32_101 : i32
    scf.if %165 {
      %c0_102 = arith.constant 0 : index
      %c0_103 = arith.constant 0 : index
      %166 = vector.load %arg7[%c0_102, %c0_103] : memref<32x32xf32, #tpu.memory_space<vmem>>, vector<32x32xf32>
      %c0_104 = arith.constant 0 : index
      %c0_105 = arith.constant 0 : index
      %c0_106 = arith.constant 0 : index
      %167 = vector.load %arg20[%c0_104, %c0_105, %c0_106] : memref<4x8x8xf32, #tpu.memory_space<vmem>>, vector<1x8x8xf32>
      %168 = vector.shape_cast %167 : vector<1x8x8xf32> to vector<8x8xf32>
      %c0_107 = arith.constant 0 : index
      %c0_108 = arith.constant 0 : index
      %c0_109 = arith.constant 0 : index
      %169 = vector.load %arg19[%c0_107, %c0_108, %c0_109] : memref<4x8x1xf32, #tpu.memory_space<vmem>>, vector<1x8x1xf32>
      %170 = vector.shape_cast %169 : vector<1x8x1xf32> to vector<8x1xf32>
      %171 = tpu.reciprocal %170 {approx = true} : vector<8x1xf32> -> vector<8x1xf32>
      %172 = vector.broadcast %171 : vector<8x1xf32> to vector<8x8xf32>
      %173 = arith.mulf %168, %172 : vector<8x8xf32>
      %174 = vector.extract_strided_slice %166 {offsets = [0, 0], sizes = [8, 32], strides = [1, 1]} : vector<32x32xf32> to vector<8x32xf32>
      %cst_110 = arith.constant dense<0.000000e+00> : vector<8x32xf32>
      %175 = tpu.matmul %173, %174, %cst_110 {dimension_numbers = #tpu.dot_dimension_numbers<[1], [0], [0], [1], [0, 0, 1, 1], [], []>} : vector<8x8xf32>, vector<8x32xf32>, vector<8x32xf32> -> vector<8x32xf32>
      %c1_111 = arith.constant 1 : index
      %c0_112 = arith.constant 0 : index
      %c0_113 = arith.constant 0 : index
      %176 = vector.load %arg20[%c1_111, %c0_112, %c0_113] : memref<4x8x8xf32, #tpu.memory_space<vmem>>, vector<1x8x8xf32>
      %177 = vector.shape_cast %176 : vector<1x8x8xf32> to vector<8x8xf32>
      %c1_114 = arith.constant 1 : index
      %c0_115 = arith.constant 0 : index
      %c0_116 = arith.constant 0 : index
      %178 = vector.load %arg19[%c1_114, %c0_115, %c0_116] : memref<4x8x1xf32, #tpu.memory_space<vmem>>, vector<1x8x1xf32>
      %179 = vector.shape_cast %178 : vector<1x8x1xf32> to vector<8x1xf32>
      %180 = tpu.reciprocal %179 {approx = true} : vector<8x1xf32> -> vector<8x1xf32>
      %181 = vector.broadcast %180 : vector<8x1xf32> to vector<8x8xf32>
      %182 = arith.mulf %177, %181 : vector<8x8xf32>
      %183 = vector.extract_strided_slice %166 {offsets = [8, 0], sizes = [8, 32], strides = [1, 1]} : vector<32x32xf32> to vector<8x32xf32>
      %cst_117 = arith.constant dense<0.000000e+00> : vector<8x32xf32>
      %184 = tpu.matmul %182, %183, %cst_117 {dimension_numbers = #tpu.dot_dimension_numbers<[1], [0], [0], [1], [0, 0, 1, 1], [], []>} : vector<8x8xf32>, vector<8x32xf32>, vector<8x32xf32> -> vector<8x32xf32>
      %185 = arith.addf %175, %184 : vector<8x32xf32>
      %c2_118 = arith.constant 2 : index
      %c0_119 = arith.constant 0 : index
      %c0_120 = arith.constant 0 : index
      %186 = vector.load %arg20[%c2_118, %c0_119, %c0_120] : memref<4x8x8xf32, #tpu.memory_space<vmem>>, vector<1x8x8xf32>
      %187 = vector.shape_cast %186 : vector<1x8x8xf32> to vector<8x8xf32>
      %c2_121 = arith.constant 2 : index
      %c0_122 = arith.constant 0 : index
      %c0_123 = arith.constant 0 : index
      %188 = vector.load %arg19[%c2_121, %c0_122, %c0_123] : memref<4x8x1xf32, #tpu.memory_space<vmem>>, vector<1x8x1xf32>
      %189 = vector.shape_cast %188 : vector<1x8x1xf32> to vector<8x1xf32>
      %190 = tpu.reciprocal %189 {approx = true} : vector<8x1xf32> -> vector<8x1xf32>
      %191 = vector.broadcast %190 : vector<8x1xf32> to vector<8x8xf32>
      %192 = arith.mulf %187, %191 : vector<8x8xf32>
      %193 = vector.extract_strided_slice %166 {offsets = [16, 0], sizes = [8, 32], strides = [1, 1]} : vector<32x32xf32> to vector<8x32xf32>
      %cst_124 = arith.constant dense<0.000000e+00> : vector<8x32xf32>
      %194 = tpu.matmul %192, %193, %cst_124 {dimension_numbers = #tpu.dot_dimension_numbers<[1], [0], [0], [1], [0, 0, 1, 1], [], []>} : vector<8x8xf32>, vector<8x32xf32>, vector<8x32xf32> -> vector<8x32xf32>
      %195 = arith.addf %185, %194 : vector<8x32xf32>
      %c3_125 = arith.constant 3 : index
      %c0_126 = arith.constant 0 : index
      %c0_127 = arith.constant 0 : index
      %196 = vector.load %arg20[%c3_125, %c0_126, %c0_127] : memref<4x8x8xf32, #tpu.memory_space<vmem>>, vector<1x8x8xf32>
      %197 = vector.shape_cast %196 : vector<1x8x8xf32> to vector<8x8xf32>
      %c3_128 = arith.constant 3 : index
      %c0_129 = arith.constant 0 : index
      %c0_130 = arith.constant 0 : index
      %198 = vector.load %arg19[%c3_128, %c0_129, %c0_130] : memref<4x8x1xf32, #tpu.memory_space<vmem>>, vector<1x8x1xf32>
      %199 = vector.shape_cast %198 : vector<1x8x1xf32> to vector<8x1xf32>
      %200 = tpu.reciprocal %199 {approx = true} : vector<8x1xf32> -> vector<8x1xf32>
      %201 = vector.broadcast %200 : vector<8x1xf32> to vector<8x8xf32>
      %202 = arith.mulf %197, %201 : vector<8x8xf32>
      %203 = vector.extract_strided_slice %166 {offsets = [24, 0], sizes = [8, 32], strides = [1, 1]} : vector<32x32xf32> to vector<8x32xf32>
      %cst_131 = arith.constant dense<0.000000e+00> : vector<8x32xf32>
      %204 = tpu.matmul %202, %203, %cst_131 {dimension_numbers = #tpu.dot_dimension_numbers<[1], [0], [0], [1], [0, 0, 1, 1], [], []>} : vector<8x8xf32>, vector<8x32xf32>, vector<8x32xf32> -> vector<8x32xf32>
      %205 = arith.addf %195, %204 : vector<8x32xf32>
      %c0_132 = arith.constant 0 : index
      %c0_133 = arith.constant 0 : index
      %206 = vector.load %arg8[%c0_132, %c0_133] : memref<1x32xf32, #tpu.memory_space<vmem>>, vector<1x32xf32>
      %207 = vector.broadcast %206 : vector<1x32xf32> to vector<8x32xf32>
      %208 = arith.addf %205, %207 : vector<8x32xf32>
      %209 = arith.addf %208, %4 : vector<8x32xf32>
      %c0_134 = arith.constant 0 : index
      %c0_135 = arith.constant 0 : index
      %210 = vector.load %arg9[%c0_134, %c0_135] : memref<1x32xf32, #tpu.memory_space<vmem>>, vector<1x32xf32>
      %c0_136 = arith.constant 0 : index
      %c0_137 = arith.constant 0 : index
      %211 = vector.load %arg10[%c0_136, %c0_137] : memref<1x32xf32, #tpu.memory_space<vmem>>, vector<1x32xf32>
      %cst_138 = arith.constant dense<0.000000e+00> : vector<8xf32>
      %212 = vector.multi_reduction <add>, %209, %cst_138 [1] : vector<8x32xf32> to vector<8xf32>
      %213 = vector.shape_cast %212 : vector<8xf32> to vector<8x1xf32>
      %cst_139 = arith.constant 3.200000e+01 : f32
      %214 = vector.broadcast %cst_139 : f32 to vector<8x1xf32>
      %215 = arith.divf %213, %214 : vector<8x1xf32>
      %216 = vector.broadcast %215 : vector<8x1xf32> to vector<8x32xf32>
      %217 = arith.subf %209, %216 : vector<8x32xf32>
      %218 = arith.mulf %217, %217 : vector<8x32xf32>
      %cst_140 = arith.constant dense<0.000000e+00> : vector<8xf32>
      %219 = vector.multi_reduction <add>, %218, %cst_140 [1] : vector<8x32xf32> to vector<8xf32>
      %220 = vector.shape_cast %219 : vector<8xf32> to vector<8x1xf32>
      %cst_141 = arith.constant 3.200000e+01 : f32
      %221 = vector.broadcast %cst_141 : f32 to vector<8x1xf32>
      %222 = arith.divf %220, %221 : vector<8x1xf32>
      %223 = vector.broadcast %215 : vector<8x1xf32> to vector<8x32xf32>
      %224 = arith.subf %209, %223 : vector<8x32xf32>
      %cst_142 = arith.constant 9.99999974E-6 : f32
      %225 = vector.broadcast %cst_142 : f32 to vector<8x1xf32>
      %226 = arith.addf %222, %225 : vector<8x1xf32>
      %227 = math.rsqrt %226 : vector<8x1xf32>
      %228 = vector.broadcast %227 : vector<8x1xf32> to vector<8x32xf32>
      %229 = arith.mulf %224, %228 : vector<8x32xf32>
      %230 = vector.broadcast %210 : vector<1x32xf32> to vector<8x32xf32>
      %231 = arith.mulf %229, %230 : vector<8x32xf32>
      %232 = vector.broadcast %211 : vector<1x32xf32> to vector<8x32xf32>
      %233 = arith.addf %231, %232 : vector<8x32xf32>
      %c0_143 = arith.constant 0 : index
      %c0_144 = arith.constant 0 : index
      %234 = vector.load %arg11[%c0_143, %c0_144] : memref<32x128xf32, #tpu.memory_space<vmem>>, vector<32x128xf32>
      %cst_145 = arith.constant dense<0.000000e+00> : vector<8x128xf32>
      %235 = tpu.matmul %233, %234, %cst_145 {dimension_numbers = #tpu.dot_dimension_numbers<[1], [0], [0], [1], [0, 0, 1, 1], [], []>} : vector<8x32xf32>, vector<32x128xf32>, vector<8x128xf32> -> vector<8x128xf32>
      %c0_146 = arith.constant 0 : index
      %c0_147 = arith.constant 0 : index
      %236 = vector.load %arg12[%c0_146, %c0_147] : memref<1x128xf32, #tpu.memory_space<vmem>>, vector<1x128xf32>
      %237 = vector.broadcast %236 : vector<1x128xf32> to vector<8x128xf32>
      %238 = arith.addf %235, %237 : vector<8x128xf32>
      %cst_148 = arith.constant 0.000000e+00 : f32
      %239 = vector.broadcast %cst_148 : f32 to vector<8x128xf32>
      %240 = arith.maximumf %238, %239 : vector<8x128xf32>
      %c0_149 = arith.constant 0 : index
      %c0_150 = arith.constant 0 : index
      %241 = vector.load %arg13[%c0_149, %c0_150] : memref<128x32xf32, #tpu.memory_space<vmem>>, vector<128x32xf32>
      %cst_151 = arith.constant dense<0.000000e+00> : vector<8x32xf32>
      %242 = tpu.matmul %240, %241, %cst_151 {dimension_numbers = #tpu.dot_dimension_numbers<[1], [0], [0], [1], [0, 0, 1, 1], [], []>} : vector<8x128xf32>, vector<128x32xf32>, vector<8x32xf32> -> vector<8x32xf32>
      %c0_152 = arith.constant 0 : index
      %c0_153 = arith.constant 0 : index
      %243 = vector.load %arg14[%c0_152, %c0_153] : memref<1x32xf32, #tpu.memory_space<vmem>>, vector<1x32xf32>
      %244 = vector.broadcast %243 : vector<1x32xf32> to vector<8x32xf32>
      %245 = arith.addf %242, %244 : vector<8x32xf32>
      %246 = arith.addf %245, %233 : vector<8x32xf32>
      %c0_154 = arith.constant 0 : index
      %c0_155 = arith.constant 0 : index
      %247 = vector.load %arg15[%c0_154, %c0_155] : memref<1x32xf32, #tpu.memory_space<vmem>>, vector<1x32xf32>
      %c0_156 = arith.constant 0 : index
      %c0_157 = arith.constant 0 : index
      %248 = vector.load %arg16[%c0_156, %c0_157] : memref<1x32xf32, #tpu.memory_space<vmem>>, vector<1x32xf32>
      %cst_158 = arith.constant dense<0.000000e+00> : vector<8xf32>
      %249 = vector.multi_reduction <add>, %246, %cst_158 [1] : vector<8x32xf32> to vector<8xf32>
      %250 = vector.shape_cast %249 : vector<8xf32> to vector<8x1xf32>
      %cst_159 = arith.constant 3.200000e+01 : f32
      %251 = vector.broadcast %cst_159 : f32 to vector<8x1xf32>
      %252 = arith.divf %250, %251 : vector<8x1xf32>
      %253 = vector.broadcast %252 : vector<8x1xf32> to vector<8x32xf32>
      %254 = arith.subf %246, %253 : vector<8x32xf32>
      %255 = arith.mulf %254, %254 : vector<8x32xf32>
      %cst_160 = arith.constant dense<0.000000e+00> : vector<8xf32>
      %256 = vector.multi_reduction <add>, %255, %cst_160 [1] : vector<8x32xf32> to vector<8xf32>
      %257 = vector.shape_cast %256 : vector<8xf32> to vector<8x1xf32>
      %cst_161 = arith.constant 3.200000e+01 : f32
      %258 = vector.broadcast %cst_161 : f32 to vector<8x1xf32>
      %259 = arith.divf %257, %258 : vector<8x1xf32>
      %260 = vector.broadcast %252 : vector<8x1xf32> to vector<8x32xf32>
      %261 = arith.subf %246, %260 : vector<8x32xf32>
      %cst_162 = arith.constant 9.99999974E-6 : f32
      %262 = vector.broadcast %cst_162 : f32 to vector<8x1xf32>
      %263 = arith.addf %259, %262 : vector<8x1xf32>
      %264 = math.rsqrt %263 : vector<8x1xf32>
      %265 = vector.broadcast %264 : vector<8x1xf32> to vector<8x32xf32>
      %266 = arith.mulf %261, %265 : vector<8x32xf32>
      %267 = vector.broadcast %247 : vector<1x32xf32> to vector<8x32xf32>
      %268 = arith.mulf %266, %267 : vector<8x32xf32>
      %269 = vector.broadcast %248 : vector<1x32xf32> to vector<8x32xf32>
      %270 = arith.addf %268, %269 : vector<8x32xf32>
      %c0_163 = arith.constant 0 : index
      %c0_164 = arith.constant 0 : index
      %c0_165 = arith.constant 0 : index
      %271 = vector.load %arg17[%c0_163, %c0_164, %c0_165] : memref<1x8x32xf32, #tpu.memory_space<vmem>>, vector<1x8x32xf32>
      %272 = vector.shape_cast %271 : vector<1x8x32xf32> to vector<8x32xf32>
      %273 = vector.shape_cast %270 : vector<8x32xf32> to vector<1x8x32xf32>
      tpu.vector_store %arg17[%c0_163, %c0_164, %c0_165], %273 {strides = array<i32>} : memref<1x8x32xf32, #tpu.memory_space<vmem>>, vector<1x8x32xf32>,
    } else {
    }
    return
  }
  func.func @transform_0(%arg0: i32, %arg1: i32, %arg2: i32) -> (i32, i32, i32) {
    %c0_i32 = arith.constant 0 : i32
    %c0_i32_0 = arith.constant 0 : i32
    return %arg0, %arg2, %c0_i32 : i32, i32, i32
  }
  func.func @transform_1(%arg0: i32, %arg1: i32, %arg2: i32) -> (i32, i32, i32) {
    %c0_i32 = arith.constant 0 : i32
    %c0_i32_0 = arith.constant 0 : i32
    return %arg0, %arg2, %c0_i32 : i32, i32, i32
  }
  func.func @transform_2(%arg0: i32, %arg1: i32, %arg2: i32) -> (i32, i32, i32) {
    %c0_i32 = arith.constant 0 : i32
    %c0_i32_0 = arith.constant 0 : i32
    return %arg0, %arg1, %c0_i32 : i32, i32, i32
  }
  func.func @transform_3(%arg0: i32, %arg1: i32, %arg2: i32) -> (i32, i32, i32) {
    %c0_i32 = arith.constant 0 : i32
    return %arg0, %arg1, %arg2 : i32, i32, i32
  }
  func.func @transform_4(%arg0: i32, %arg1: i32, %arg2: i32) -> (i32, i32) {
    %c0_i32 = arith.constant 0 : i32
    %c0_i32_0 = arith.constant 0 : i32
    %c0_i32_1 = arith.constant 0 : i32
    return %c0_i32, %c0_i32_0 : i32, i32
  }
  func.func @transform_5(%arg0: i32, %arg1: i32, %arg2: i32) -> (i32, i32) {
    %c0_i32 = arith.constant 0 : i32
    %c0_i32_0 = arith.constant 0 : i32
    %c0_i32_1 = arith.constant 0 : i32
    return %c0_i32, %c0_i32_0 : i32, i32
  }
  func.func @transform_6(%arg0: i32, %arg1: i32, %arg2: i32) -> (i32, i32) {
    %c0_i32 = arith.constant 0 : i32
    %c0_i32_0 = arith.constant 0 : i32
    %c0_i32_1 = arith.constant 0 : i32
    return %c0_i32, %c0_i32_0 : i32, i32
  }
  func.func @transform_7(%arg0: i32, %arg1: i32, %arg2: i32) -> (i32, i32) {
    %c0_i32 = arith.constant 0 : i32
    %c0_i32_0 = arith.constant 0 : i32
    %c0_i32_1 = arith.constant 0 : i32
    return %c0_i32, %c0_i32_0 : i32, i32
  }
  func.func @transform_8(%arg0: i32, %arg1: i32, %arg2: i32) -> (i32, i32) {
    %c0_i32 = arith.constant 0 : i32
    %c0_i32_0 = arith.constant 0 : i32
    %c0_i32_1 = arith.constant 0 : i32
    return %c0_i32, %c0_i32_0 : i32, i32
  }
  func.func @transform_9(%arg0: i32, %arg1: i32, %arg2: i32) -> (i32, i32) {
    %c0_i32 = arith.constant 0 : i32
    %c0_i32_0 = arith.constant 0 : i32
    %c0_i32_1 = arith.constant 0 : i32
    return %c0_i32, %c0_i32_0 : i32, i32
  }
  func.func @transform_10(%arg0: i32, %arg1: i32, %arg2: i32) -> (i32, i32) {
    %c0_i32 = arith.constant 0 : i32
    %c0_i32_0 = arith.constant 0 : i32
    %c0_i32_1 = arith.constant 0 : i32
    return %c0_i32, %c0_i32_0 : i32, i32
  }
  func.func @transform_11(%arg0: i32, %arg1: i32, %arg2: i32) -> (i32, i32) {
    %c0_i32 = arith.constant 0 : i32
    %c0_i32_0 = arith.constant 0 : i32
    %c0_i32_1 = arith.constant 0 : i32
    return %c0_i32, %c0_i32_0 : i32, i32
  }
  func.func @transform_12(%arg0: i32, %arg1: i32, %arg2: i32) -> (i32, i32) {
    %c0_i32 = arith.constant 0 : i32
    %c0_i32_0 = arith.constant 0 : i32
    %c0_i32_1 = arith.constant 0 : i32
    return %c0_i32, %c0_i32_0 : i32, i32
  }
  func.func @transform_13(%arg0: i32, %arg1: i32, %arg2: i32) -> (i32, i32) {
    %c0_i32 = arith.constant 0 : i32
    %c0_i32_0 = arith.constant 0 : i32
    %c0_i32_1 = arith.constant 0 : i32
    return %c0_i32, %c0_i32_0 : i32, i32
  }
  func.func @transform_14(%arg0: i32, %arg1: i32, %arg2: i32) -> (i32, i32, i32) {
    %c0_i32 = arith.constant 0 : i32
    %c0_i32_0 = arith.constant 0 : i32
    return %arg0, %arg1, %c0_i32 : i32, i32, i32
  }
}

</mosaic_0001>

<llo_original>
// kernel: tpu_custom_call.1
$region0: #{tpu_custom_call.1}
  #allocation0 [shape = 'u32[]', space=smem, size = 0x4, offset = 0x4, fixed_abs, tag = 'smem constant byte address 0x4 - core index']
  #allocation1 [shape = 'u32[144,128]{1,0:T(1,128)}', space=vmem, size = 0x12000, scoped, tag = 'internal scratch']
  #allocation2 [shape = 'f32[4,8,1]{2,1,0:T(8,128)}', space=vmem, size = 0x4000, scoped, tag = 'scratch operand']
  #allocation3 [shape = 'f32[4,8,1]{2,1,0:T(8,128)}', space=vmem, size = 0x4000, scoped, tag = 'scratch operand']
  #allocation4 [shape = 'f32[4,8,8]{2,1,0:T(8,128)}', space=vmem, size = 0x4000, scoped, tag = 'scratch operand']
  %s0 = inlined_call_operand.vmem [shape: f32[2,8,32], index: 0, kind: input, shape index: {}]
  %s1 = inlined_call_operand.vmem [shape: f32[2,8,32], index: 1, kind: input, shape index: {}]
  %s2 = inlined_call_operand.vmem [shape: f32[2,8,32], index: 2, kind: input, shape index: {}]
  %s3 = inlined_call_operand.vmem [shape: s8[2,8,8], index: 3, kind: input, shape index: {}]
  %s4 = inlined_call_operand.vmem [shape: f32[32,32], index: 4, kind: input, shape index: {}]
  %s5 = inlined_call_operand.vmem [shape: f32[1,32], index: 5, kind: input, shape index: {}]
  %s6 = inlined_call_operand.vmem [shape: f32[1,32], index: 6, kind: input, shape index: {}]
  %s7 = inlined_call_operand.vmem [shape: f32[1,32], index: 7, kind: input, shape index: {}]
  %s8 = inlined_call_operand.vmem [shape: f32[32,128], index: 8, kind: input, shape index: {}]
  %s9 = inlined_call_operand.vmem [shape: f32[1,128], index: 9, kind: input, shape index: {}]
  %s10 = inlined_call_operand.vmem [shape: f32[128,32], index: 10, kind: input, shape index: {}]
  %s11 = inlined_call_operand.vmem [shape: f32[1,32], index: 11, kind: input, shape index: {}]
  %s12 = inlined_call_operand.vmem [shape: f32[1,32], index: 12, kind: input, shape index: {}]
  %s13 = inlined_call_operand.vmem [shape: f32[1,32], index: 13, kind: input, shape index: {}]
  %s14 = inlined_call_operand.hbm [shape: f32[2,8,32], index: 14, kind: output, shape index: {}]
  %s15 = sld [smem:[#allocation0]]
  $region97: #{tpu_custom_call.1} parent=0
    _
  %s17 = ssub.s32 1, %s15
  %s18 = scalar_select 0, %s17, %s15
  $region1: #{tpu_custom_call.1} parent=0
    #allocation5 [shape = 'u8[8192]{0}', space=vmem, size = 0x2000, scoped, tag = 'output window, operand 0']
    #allocation6 [shape = 's32[2]{0}', space=sflag, size = 0x8, scoped, tag = 'scoped memory for tpu_custom_call.1']
    %19 = vsyncpa [#allocation6], 0
    %s20 = scalar_lea.sflag [#allocation6], 1
    %21 = vsyncpa %s20, 0
    loop: start=0, step=1, limit=4
    $region2: #{tpu_custom_call.1} parent=1 // loop_pre_header
      _
    $region3: #{tpu_custom_call.1} parent=1 // loop_header
      %s23 = sphi 0, %s27
      %p24 = scmp.ge.s32.totalorder %s23, 4
      %s30 = sphi 0, %s49
      %s31 = sphi 0, %s45
      %s32 = sphi 0, %s41
      %s33 = sphi 0, %s30
      %s34 = sphi 0, %s31
      %s35 = sphi 0, %s32
      %s36 = sphi 0, %s33
      %s37 = sphi 0, %s34
      %s38 = sphi 0, %s35
      %s54 = sphi 0, %s56
      %s57 = sphi 0, %s54
      %s58 = sphi 0, %s57
      %s74 = sphi 0, %s58
      %s82 = sphi 0, %s84
      %s85 = sphi 0, %s82
      %s86 = sphi 0, %s85
      %s102 = sphi 0, %s86
      %s110 = sphi 0, %s112
      %s113 = sphi 0, %s110
      %s114 = sphi 0, %s113
      %s130 = sphi 0, %s114
      %s140 = sphi 0, %s142
      %s143 = sphi 0, %s140
      %s144 = sphi 0, %s143
      %s160 = sphi 0, %s144
      %s164 = sphi 0, %s164
      %s166 = sphi 0, %s164
      %s167 = sphi 0, %s166
      %s181 = sphi 0, %s167
      %s185 = sphi 0, %s185
      %s187 = sphi 0, %s185
      %s188 = sphi 0, %s187
      %s202 = sphi 0, %s188
      %s206 = sphi 0, %s206
      %s208 = sphi 0, %s206
      %s209 = sphi 0, %s208
      %s223 = sphi 0, %s209
      %s227 = sphi 0, %s227
      %s229 = sphi 0, %s227
      %s230 = sphi 0, %s229
      %s244 = sphi 0, %s230
      %s248 = sphi 0, %s248
      %s250 = sphi 0, %s248
      %s251 = sphi 0, %s250
      %s265 = sphi 0, %s251
      %s269 = sphi 0, %s269
      %s271 = sphi 0, %s269
      %s272 = sphi 0, %s271
      %s286 = sphi 0, %s272
      %s290 = sphi 0, %s290
      %s292 = sphi 0, %s290
      %s293 = sphi 0, %s292
      %s307 = sphi 0, %s293
      %s311 = sphi 0, %s311
      %s313 = sphi 0, %s311
      %s314 = sphi 0, %s313
      %s328 = sphi 0, %s314
      %s332 = sphi 0, %s332
      %s334 = sphi 0, %s332
      %s335 = sphi 0, %s334
      %s349 = sphi 0, %s335
      %s353 = sphi 0, %s353
      %s355 = sphi 0, %s353
      %s356 = sphi 0, %s355
      %s370 = sphi 0, %s356
      %s378 = sphi 0, %s380
      %s381 = sphi 0, %s378
      %s382 = sphi 0, %s381
      %s398 = sphi 0, %s382
    $region4: #{tpu_custom_call.1} parent=1 // loop_header_branch
      %26 = sbr.rel (%p24) target = $region8
    $region5: #{tpu_custom_call.1} parent=1 // loop_body
      %s28 = ssub.s32 %s23, 1
      %s29 = ssub.s32 %s23, 2
      %s39 = sadd.s32 1, %s32
      %p40 = scmp.ge.s32.totalorder %s39, 1
      %s41 = scalar_select %p40, 0, %s39
      %s42 = sadd.s32 1, %s31
      %s43 = scalar_select %p40, %s42, %s31
      %p44 = scmp.ge.s32.totalorder %s43, 1
      %s45 = scalar_select %p44, 0, %s43
      %s46 = sadd.s32 1, %s30
      %s47 = scalar_select %p44, %s46, %s30
      %p48 = scmp.ge.s32.totalorder %s47, 2
      %s49 = scalar_select %p48, 0, %s47
      %s50 = ssub.s32 %s30, %s49
      %s51 = ssub.s32 %s32, %s41
      %s52 = sor.u32 %s50, %s51
      %p53 = scmp.eq.s32.totalorder %s52, 0
      %s55 = sadd.s32 %s54, 1
      %s56 = scalar_select %p53, %s54, %s55
      %p59 = pneg %p53
      %p60 = scmp.eq.s32.totalorder %s23, 1
      %p61 = por %p59, %p60
      %p62 = scmp.ne.s32.totalorder %s54, %s57
      %p63 = scmp.eq.s32.totalorder %s23, 0
      %p64 = por %p62, %p63
      %p65 = scmp.ne.s32.totalorder %s54, %s57
      %p66 = scmp.eq.s32.totalorder %s28, 1
      %p67 = por %p65, %p66
      %p68 = scmp.ne.s32.totalorder %s57, %s58
      %p69 = scmp.eq.s32.totalorder %s28, 0
      %p70 = por %p68, %p69
      %p71 = scmp.ne.s32.totalorder %s57, %s58
      %p72 = scmp.eq.s32.totalorder %s29, 1
      %p73 = por %p71, %p72
      %p75 = scmp.ne.s32.totalorder %s58, %s74
      %p76 = scmp.eq.s32.totalorder %s29, 0
      %p77 = por %p75, %p76
      %s78 = ssub.s32 %s30, %s49
      %s79 = ssub.s32 %s32, %s41
      %s80 = sor.u32 %s78, %s79
      %p81 = scmp.eq.s32.totalorder %s80, 0
      %s83 = sadd.s32 %s82, 1
      %s84 = scalar_select %p81, %s82, %s83
      %p87 = pneg %p81
      %p88 = scmp.eq.s32.totalorder %s23, 1
      %p89 = por %p87, %p88
      %p90 = scmp.ne.s32.totalorder %s82, %s85
      %p91 = scmp.eq.s32.totalorder %s23, 0
      %p92 = por %p90, %p91
      %p93 = scmp.ne.s32.totalorder %s82, %s85
      %p94 = scmp.eq.s32.totalorder %s28, 1
      %p95 = por %p93, %p94
      %p96 = scmp.ne.s32.totalorder %s85, %s86
      %p97 = scmp.eq.s32.totalorder %s28, 0
      %p98 = por %p96, %p97
      %p99 = scmp.ne.s32.totalorder %s85, %s86
      %p100 = scmp.eq.s32.totalorder %s29, 1
      %p101 = por %p99, %p100
      %p103 = scmp.ne.s32.totalorder %s86, %s102
      %p104 = scmp.eq.s32.totalorder %s29, 0
      %p105 = por %p103, %p104
      %s106 = ssub.s32 %s30, %s49
      %s107 = ssub.s32 %s31, %s45
      %s108 = sor.u32 %s106, %s107
      %p109 = scmp.eq.s32.totalorder %s108, 0
      %s111 = sadd.s32 %s110, 1
      %s112 = scalar_select %p109, %s110, %s111
      %p115 = pneg %p109
      %p116 = scmp.eq.s32.totalorder %s23, 1
      %p117 = por %p115, %p116
      %p118 = scmp.ne.s32.totalorder %s110, %s113
      %p119 = scmp.eq.s32.totalorder %s23, 0
      %p120 = por %p118, %p119
      %p121 = scmp.ne.s32.totalorder %s110, %s113
      %p122 = scmp.eq.s32.totalorder %s28, 1
      %p123 = por %p121, %p122
      %p124 = scmp.ne.s32.totalorder %s113, %s114
      %p125 = scmp.eq.s32.totalorder %s28, 0
      %p126 = por %p124, %p125
      %p127 = scmp.ne.s32.totalorder %s113, %s114
      %p128 = scmp.eq.s32.totalorder %s29, 1
      %p129 = por %p127, %p128
      %p131 = scmp.ne.s32.totalorder %s114, %s130
      %p132 = scmp.eq.s32.totalorder %s29, 0
      %p133 = por %p131, %p132
      %s134 = ssub.s32 %s30, %s49
      %s135 = ssub.s32 %s31, %s45
      %s136 = sor.u32 %s134, %s135
      %s137 = ssub.s32 %s32, %s41
      %s138 = sor.u32 %s136, %s137
      %p139 = scmp.eq.s32.totalorder %s138, 0
      %s141 = sadd.s32 %s140, 1
      %s142 = scalar_select %p139, %s140, %s141
      %p145 = pneg %p139
      %p146 = scmp.eq.s32.totalorder %s23, 1
      %p147 = por %p145, %p146
      %p148 = scmp.ne.s32.totalorder %s140, %s143
      %p149 = scmp.eq.s32.totalorder %s23, 0
      %p150 = por %p148, %p149
      %p151 = scmp.ne.s32.totalorder %s140, %s143
      %p152 = scmp.eq.s32.totalorder %s28, 1
      %p153 = por %p151, %p152
      %p154 = scmp.ne.s32.totalorder %s143, %s144
      %p155 = scmp.eq.s32.totalorder %s28, 0
      %p156 = por %p154, %p155
      %p157 = scmp.ne.s32.totalorder %s143, %s144
      %p158 = scmp.eq.s32.totalorder %s29, 1
      %p159 = por %p157, %p158
      %p161 = scmp.ne.s32.totalorder %s144, %s160
      %p162 = scmp.eq.s32.totalorder %s29, 0
      %p163 = por %p161, %p162
      %s165 = sadd.s32 %s164, 1
      %p168 = scmp.eq.s32.totalorder %s23, 1
      %p169 = scmp.ne.s32.totalorder %s164, %s166
      %p170 = scmp.eq.s32.totalorder %s23, 0
      %p171 = por %p169, %p170
      %p172 = scmp.ne.s32.totalorder %s164, %s166
      %p173 = scmp.eq.s32.totalorder %s28, 1
      %p174 = por %p172, %p173
      %p175 = scmp.ne.s32.totalorder %s166, %s167
      %p176 = scmp.eq.s32.totalorder %s28, 0
      %p177 = por %p175, %p176
      %p178 = scmp.ne.s32.totalorder %s166, %s167
      %p179 = scmp.eq.s32.totalorder %s29, 1
      %p180 = por %p178, %p179
      %p182 = scmp.ne.s32.totalorder %s167, %s181
      %p183 = scmp.eq.s32.totalorder %s29, 0
      %p184 = por %p182, %p183
      %s186 = sadd.s32 %s185, 1
      %p189 = scmp.eq.s32.totalorder %s23, 1
      %p190 = scmp.ne.s32.totalorder %s185, %s187
      %p191 = scmp.eq.s32.totalorder %s23, 0
      %p192 = por %p190, %p191
      %p193 = scmp.ne.s32.totalorder %s185, %s187
      %p194 = scmp.eq.s32.totalorder %s28, 1
      %p195 = por %p193, %p194
      %p196 = scmp.ne.s32.totalorder %s187, %s188
      %p197 = scmp.eq.s32.totalorder %s28, 0
      %p198 = por %p196, %p197
      %p199 = scmp.ne.s32.totalorder %s187, %s188
      %p200 = scmp.eq.s32.totalorder %s29, 1
      %p201 = por %p199, %p200
      %p203 = scmp.ne.s32.totalorder %s188, %s202
      %p204 = scmp.eq.s32.totalorder %s29, 0
      %p205 = por %p203, %p204
      %s207 = sadd.s32 %s206, 1
      %p210 = scmp.eq.s32.totalorder %s23, 1
      %p211 = scmp.ne.s32.totalorder %s206, %s208
      %p212 = scmp.eq.s32.totalorder %s23, 0
      %p213 = por %p211, %p212
      %p214 = scmp.ne.s32.totalorder %s206, %s208
      %p215 = scmp.eq.s32.totalorder %s28, 1
      %p216 = por %p214, %p215
      %p217 = scmp.ne.s32.totalorder %s208, %s209
      %p218 = scmp.eq.s32.totalorder %s28, 0
      %p219 = por %p217, %p218
      %p220 = scmp.ne.s32.totalorder %s208, %s209
      %p221 = scmp.eq.s32.totalorder %s29, 1
      %p222 = por %p220, %p221
      %p224 = scmp.ne.s32.totalorder %s209, %s223
      %p225 = scmp.eq.s32.totalorder %s29, 0
      %p226 = por %p224, %p225
      %s228 = sadd.s32 %s227, 1
      %p231 = scmp.eq.s32.totalorder %s23, 1
      %p232 = scmp.ne.s32.totalorder %s227, %s229
      %p233 = scmp.eq.s32.totalorder %s23, 0
      %p234 = por %p232, %p233
      %p235 = scmp.ne.s32.totalorder %s227, %s229
      %p236 = scmp.eq.s32.totalorder %s28, 1
      %p237 = por %p235, %p236
      %p238 = scmp.ne.s32.totalorder %s229, %s230
      %p239 = scmp.eq.s32.totalorder %s28, 0
      %p240 = por %p238, %p239
      %p241 = scmp.ne.s32.totalorder %s229, %s230
      %p242 = scmp.eq.s32.totalorder %s29, 1
      %p243 = por %p241, %p242
      %p245 = scmp.ne.s32.totalorder %s230, %s244
      %p246 = scmp.eq.s32.totalorder %s29, 0
      %p247 = por %p245, %p246
      %s249 = sadd.s32 %s248, 1
      %p252 = scmp.eq.s32.totalorder %s23, 1
      %p253 = scmp.ne.s32.totalorder %s248, %s250
      %p254 = scmp.eq.s32.totalorder %s23, 0
      %p255 = por %p253, %p254
      %p256 = scmp.ne.s32.totalorder %s248, %s250
      %p257 = scmp.eq.s32.totalorder %s28, 1
      %p258 = por %p256, %p257
      %p259 = scmp.ne.s32.totalorder %s250, %s251
      %p260 = scmp.eq.s32.totalorder %s28, 0
      %p261 = por %p259, %p260
      %p262 = scmp.ne.s32.totalorder %s250, %s251
      %p263 = scmp.eq.s32.totalorder %s29, 1
      %p264 = por %p262, %p263
      %p266 = scmp.ne.s32.totalorder %s251, %s265
      %p267 = scmp.eq.s32.totalorder %s29, 0
      %p268 = por %p266, %p267
      %s270 = sadd.s32 %s269, 1
      %p273 = scmp.eq.s32.totalorder %s23, 1
      %p274 = scmp.ne.s32.totalorder %s269, %s271
      %p275 = scmp.eq.s32.totalorder %s23, 0
      %p276 = por %p274, %p275
      %p277 = scmp.ne.s32.totalorder %s269, %s271
      %p278 = scmp.eq.s32.totalorder %s28, 1
      %p279 = por %p277, %p278
      %p280 = scmp.ne.s32.totalorder %s271, %s272
      %p281 = scmp.eq.s32.totalorder %s28, 0
      %p282 = por %p280, %p281
      %p283 = scmp.ne.s32.totalorder %s271, %s272
      %p284 = scmp.eq.s32.totalorder %s29, 1
      %p285 = por %p283, %p284
      %p287 = scmp.ne.s32.totalorder %s272, %s286
      %p288 = scmp.eq.s32.totalorder %s29, 0
      %p289 = por %p287, %p288
      %s291 = sadd.s32 %s290, 1
      %p294 = scmp.eq.s32.totalorder %s23, 1
      %p295 = scmp.ne.s32.totalorder %s290, %s292
      %p296 = scmp.eq.s32.totalorder %s23, 0
      %p297 = por %p295, %p296
      %p298 = scmp.ne.s32.totalorder %s290, %s292
      %p299 = scmp.eq.s32.totalorder %s28, 1
      %p300 = por %p298, %p299
      %p301 = scmp.ne.s32.totalorder %s292, %s293
      %p302 = scmp.eq.s32.totalorder %s28, 0
      %p303 = por %p301, %p302
      %p304 = scmp.ne.s32.totalorder %s292, %s293
      %p305 = scmp.eq.s32.totalorder %s29, 1
      %p306 = por %p304, %p305
      %p308 = scmp.ne.s32.totalorder %s293, %s307
      %p309 = scmp.eq.s32.totalorder %s29, 0
      %p310 = por %p308, %p309
      %s312 = sadd.s32 %s311, 1
      %p315 = scmp.eq.s32.totalorder %s23, 1
      %p316 = scmp.ne.s32.totalorder %s311, %s313
      %p317 = scmp.eq.s32.totalorder %s23, 0
      %p318 = por %p316, %p317
      %p319 = scmp.ne.s32.totalorder %s311, %s313
      %p320 = scmp.eq.s32.totalorder %s28, 1
      %p321 = por %p319, %p320
      %p322 = scmp.ne.s32.totalorder %s313, %s314
      %p323 = scmp.eq.s32.totalorder %s28, 0
      %p324 = por %p322, %p323
      %p325 = scmp.ne.s32.totalorder %s313, %s314
      %p326 = scmp.eq.s32.totalorder %s29, 1
      %p327 = por %p325, %p326
      %p329 = scmp.ne.s32.totalorder %s314, %s328
      %p330 = scmp.eq.s32.totalorder %s29, 0
      %p331 = por %p329, %p330
      %s333 = sadd.s32 %s332, 1
      %p336 = scmp.eq.s32.totalorder %s23, 1
      %p337 = scmp.ne.s32.totalorder %s332, %s334
      %p338 = scmp.eq.s32.totalorder %s23, 0
      %p339 = por %p337, %p338
      %p340 = scmp.ne.s32.totalorder %s332, %s334
      %p341 = scmp.eq.s32.totalorder %s28, 1
      %p342 = por %p340, %p341
      %p343 = scmp.ne.s32.totalorder %s334, %s335
      %p344 = scmp.eq.s32.totalorder %s28, 0
      %p345 = por %p343, %p344
      %p346 = scmp.ne.s32.totalorder %s334, %s335
      %p347 = scmp.eq.s32.totalorder %s29, 1
      %p348 = por %p346, %p347
      %p350 = scmp.ne.s32.totalorder %s335, %s349
      %p351 = scmp.eq.s32.totalorder %s29, 0
      %p352 = por %p350, %p351
      %s354 = sadd.s32 %s353, 1
      %p357 = scmp.eq.s32.totalorder %s23, 1
      %p358 = scmp.ne.s32.totalorder %s353, %s355
      %p359 = scmp.eq.s32.totalorder %s23, 0
      %p360 = por %p358, %p359
      %p361 = scmp.ne.s32.totalorder %s353, %s355
      %p362 = scmp.eq.s32.totalorder %s28, 1
      %p363 = por %p361, %p362
      %p364 = scmp.ne.s32.totalorder %s355, %s356
      %p365 = scmp.eq.s32.totalorder %s28, 0
      %p366 = por %p364, %p365
      %p367 = scmp.ne.s32.totalorder %s355, %s356
      %p368 = scmp.eq.s32.totalorder %s29, 1
      %p369 = por %p367, %p368
      %p371 = scmp.ne.s32.totalorder %s356, %s370
      %p372 = scmp.eq.s32.totalorder %s29, 0
      %p373 = por %p371, %p372
      %s374 = ssub.s32 %s30, %s49
      %s375 = ssub.s32 %s31, %s45
      %s376 = sor.u32 %s374, %s375
      %p377 = scmp.eq.s32.totalorder %s376, 0
      %s379 = sadd.s32 %s378, 1
      %s380 = scalar_select %p377, %s378, %s379
      %p383 = pneg %p377
      %p384 = scmp.eq.s32.totalorder %s23, 1
      %p385 = por %p383, %p384
      %p386 = scmp.ne.s32.totalorder %s378, %s381
      %p387 = scmp.eq.s32.totalorder %s23, 0
      %p388 = por %p386, %p387
      %p389 = scmp.ne.s32.totalorder %s378, %s381
      %p390 = scmp.eq.s32.totalorder %s28, 1
      %p391 = por %p389, %p390
      %p392 = scmp.ne.s32.totalorder %s381, %s382
      %p393 = scmp.eq.s32.totalorder %s28, 0
      %p394 = por %p392, %p393
      %p395 = scmp.ne.s32.totalorder %s381, %s382
      %p396 = scmp.eq.s32.totalorder %s29, 1
      %p397 = por %p395, %p396
      %p399 = scmp.ne.s32.totalorder %s382, %s398
      %p400 = scmp.eq.s32.totalorder %s29, 0
      %p401 = por %p399, %p400
      %p402 = scmp.le.s32.totalorder 1, %s23
      %p403 = scmp.lt.s32.totalorder %s23, 3
      %p404 = pnand %p402, %p403
      %p405 = pneg %p404
      // Predicated region
      $region9: #{tpu_custom_call.1} parent=5 // pred_check
        _
      $region10: #{tpu_custom_call.1} parent=5 // pred_check_branch
        %407 = sbr.rel (%p404) target = $region12
      $region11: #{tpu_custom_call.1} parent=5 // pred_region
        %s408 = ssub.s32 %s23, 1
        // Predicated region
        $region13: #{tpu_custom_call.1} parent=11 // pred_check
          %p409 = pneg %p177
        $region14: #{tpu_custom_call.1} parent=11 // pred_check_branch
          %411 = sbr.rel (%p409) target = $region16
        $region15: #{tpu_custom_call.1} parent=11 // pred_region
          _
        $region16: #{tpu_custom_call.1} parent=11 // pred_fallthru
          _
        // Predicated region
        $region17: #{tpu_custom_call.1} parent=11 // pred_check
          %p412 = pneg %p198
        $region18: #{tpu_custom_call.1} parent=11 // pred_check_branch
          %414 = sbr.rel (%p412) target = $region20
        $region19: #{tpu_custom_call.1} parent=11 // pred_region
          _
        $region20: #{tpu_custom_call.1} parent=11 // pred_fallthru
          _
        // Predicated region
        $region21: #{tpu_custom_call.1} parent=11 // pred_check
          %p415 = pneg %p219
        $region22: #{tpu_custom_call.1} parent=11 // pred_check_branch
          %417 = sbr.rel (%p415) target = $region24
        $region23: #{tpu_custom_call.1} parent=11 // pred_region
          _
        $region24: #{tpu_custom_call.1} parent=11 // pred_fallthru
          _
        // Predicated region
        $region25: #{tpu_custom_call.1} parent=11 // pred_check
          %p418 = pneg %p240
        $region26: #{tpu_custom_call.1} parent=11 // pred_check_branch
          %420 = sbr.rel (%p418) target = $region28
        $region27: #{tpu_custom_call.1} parent=11 // pred_region
          _
        $region28: #{tpu_custom_call.1} parent=11 // pred_fallthru
          _
        // Predicated region
        $region29: #{tpu_custom_call.1} parent=11 // pred_check
          %p421 = pneg %p261
        $region30: #{tpu_custom_call.1} parent=11 // pred_check_branch
          %423 = sbr.rel (%p421) target = $region32
        $region31: #{tpu_custom_call.1} parent=11 // pred_region
          _
        $region32: #{tpu_custom_call.1} parent=11 // pred_fallthru
          _
        // Predicated region
        $region33: #{tpu_custom_call.1} parent=11 // pred_check
          %p424 = pneg %p282
        $region34: #{tpu_custom_call.1} parent=11 // pred_check_branch
          %426 = sbr.rel (%p424) target = $region36
        $region35: #{tpu_custom_call.1} parent=11 // pred_region
          _
        $region36: #{tpu_custom_call.1} parent=11 // pred_fallthru
          _
        // Predicated region
        $region37: #{tpu_custom_call.1} parent=11 // pred_check
          %p427 = pneg %p303
        $region38: #{tpu_custom_call.1} parent=11 // pred_check_branch
          %429 = sbr.rel (%p427) target = $region40
        $region39: #{tpu_custom_call.1} parent=11 // pred_region
          _
        $region40: #{tpu_custom_call.1} parent=11 // pred_fallthru
          _
        // Predicated region
        $region41: #{tpu_custom_call.1} parent=11 // pred_check
          %p430 = pneg %p324
        $region42: #{tpu_custom_call.1} parent=11 // pred_check_branch
          %432 = sbr.rel (%p430) target = $region44
        $region43: #{tpu_custom_call.1} parent=11 // pred_region
          _
        $region44: #{tpu_custom_call.1} parent=11 // pred_fallthru
          _
        // Predicated region
        $region45: #{tpu_custom_call.1} parent=11 // pred_check
          %p433 = pneg %p345
        $region46: #{tpu_custom_call.1} parent=11 // pred_check_branch
          %435 = sbr.rel (%p433) target = $region48
        $region47: #{tpu_custom_call.1} parent=11 // pred_region
          _
        $region48: #{tpu_custom_call.1} parent=11 // pred_fallthru
          _
        // Predicated region
        $region49: #{tpu_custom_call.1} parent=11 // pred_check
          %p436 = pneg %p366
        $region50: #{tpu_custom_call.1} parent=11 // pred_check_branch
          %438 = sbr.rel (%p436) target = $region52
        $region51: #{tpu_custom_call.1} parent=11 // pred_region
          _
        $region52: #{tpu_custom_call.1} parent=11 // pred_fallthru
          _
      $region12: #{tpu_custom_call.1} parent=5 // pred_fallthru
        _
      %p439 = scmp.lt.s32.totalorder %s23, 2
      // Predicated region
      $region53: #{tpu_custom_call.1} parent=5 // pred_check
        %p440 = pneg %p439
      $region54: #{tpu_custom_call.1} parent=5 // pred_check_branch
        %442 = sbr.rel (%p440) target = $region56
      $region55: #{tpu_custom_call.1} parent=5 // pred_region
        // Predicated region
        $region57: #{tpu_custom_call.1} parent=55 // pred_check
          %p443 = pneg %p64
        $region58: #{tpu_custom_call.1} parent=55 // pred_check_branch
          %445 = sbr.rel (%p443) target = $region60
        $region59: #{tpu_custom_call.1} parent=55 // pred_region
          %p446 = scmp.lt.s32.totalorder %s30, 1
          %s447 = scalar_select %p446, %s30, 1
          %p448 = scmp.lt.s32.totalorder %s32, 0
          %s449 = scalar_select %p448, %s32, 0
          %s450 = sadd.s32 %s449, %s447
          %s451 = smul.addr %s450, 8
          %s452 = scalar_lea.vmem %s0, %s451
        $region60: #{tpu_custom_call.1} parent=55 // pred_fallthru
          _
        // Predicated region
        $region61: #{tpu_custom_call.1} parent=55 // pred_check
          %p453 = pneg %p92
        $region62: #{tpu_custom_call.1} parent=55 // pred_check_branch
          %455 = sbr.rel (%p453) target = $region64
        $region63: #{tpu_custom_call.1} parent=55 // pred_region
          %p456 = scmp.lt.s32.totalorder %s30, 1
          %s457 = scalar_select %p456, %s30, 1
          %p458 = scmp.lt.s32.totalorder %s32, 0
          %s459 = scalar_select %p458, %s32, 0
          %s460 = sadd.s32 %s459, %s457
          %s461 = smul.addr %s460, 8
          %s462 = scalar_lea.vmem %s1, %s461
        $region64: #{tpu_custom_call.1} parent=55 // pred_fallthru
          _
        // Predicated region
        $region65: #{tpu_custom_call.1} parent=55 // pred_check
          %p463 = pneg %p120
        $region66: #{tpu_custom_call.1} parent=55 // pred_check_branch
          %465 = sbr.rel (%p463) target = $region68
        $region67: #{tpu_custom_call.1} parent=55 // pred_region
          %p466 = scmp.lt.s32.totalorder %s30, 1
          %s467 = scalar_select %p466, %s30, 1
          %p468 = scmp.lt.s32.totalorder %s31, 0
          %s469 = scalar_select %p468, %s31, 0
          %s470 = sadd.s32 %s469, %s467
          %s471 = smul.addr %s470, 8
          %s472 = scalar_lea.vmem %s2, %s471
        $region68: #{tpu_custom_call.1} parent=55 // pred_fallthru
          _
        // Predicated region
        $region69: #{tpu_custom_call.1} parent=55 // pred_check
          %p473 = pneg %p150
        $region70: #{tpu_custom_call.1} parent=55 // pred_check_branch
          %475 = sbr.rel (%p473) target = $region72
        $region71: #{tpu_custom_call.1} parent=55 // pred_region
          %p476 = scmp.lt.s32.totalorder %s30, 1
          %s477 = scalar_select %p476, %s30, 1
          %p478 = scmp.lt.s32.totalorder %s31, 0
          %s479 = scalar_select %p478, %s31, 0
          %p480 = scmp.lt.s32.totalorder %s32, 0
          %s481 = scalar_select %p480, %s32, 0
          %s482 = sadd.s32 %s481, %s479
          %s483 = sadd.s32 %s482, %s477
          %s484 = smul.addr %s483, 2
          %s485 = scalar_lea.vmem %s3, %s484
        $region72: #{tpu_custom_call.1} parent=55 // pred_fallthru
          _
      $region56: #{tpu_custom_call.1} parent=5 // pred_fallthru
        _
      %p486 = scmp.le.s32.totalorder 1, %s23
      %p487 = scmp.lt.s32.totalorder %s23, 3
      %p488 = pnand %p486, %p487
      %p489 = pneg %p488
      // Predicated region
      $region73: #{tpu_custom_call.1} parent=5 // pred_check
        _
      $region74: #{tpu_custom_call.1} parent=5 // pred_check_branch
        %491 = sbr.rel (%p488) target = $region76
      $region75: #{tpu_custom_call.1} parent=5 // pred_region
        %s492 = ssub.s32 %s23, 1
        %p493 = scmp.lt.s32.totalorder %s33, 1
        %s494 = scalar_select %p493, %s33, 1
        %p495 = scmp.lt.s32.totalorder %s35, 0
        %s496 = scalar_select %p495, %s35, 0
        %s497 = sadd.s32 %s496, %s494
        %s498 = smul.addr %s497, 8
        %s499 = scalar_lea.vmem %s0, %s498
        %p500 = pneg %p70
        %p501 = pneg %p67
        %p502 = scmp.lt.s32.totalorder %s33, 1
        %s503 = scalar_select %p502, %s33, 1
        %p504 = scmp.lt.s32.totalorder %s35, 0
        %s505 = scalar_select %p504, %s35, 0
        %s506 = sadd.s32 %s505, %s503
        %s507 = smul.addr %s506, 8
        %s508 = scalar_lea.vmem %s1, %s507
        %p509 = pneg %p98
        %p510 = pneg %p95
        %p511 = scmp.lt.s32.totalorder %s33, 1
        %s512 = scalar_select %p511, %s33, 1
        %p513 = scmp.lt.s32.totalorder %s34, 0
        %s514 = scalar_select %p513, %s34, 0
        %s515 = sadd.s32 %s514, %s512
        %s516 = smul.addr %s515, 8
        %s517 = scalar_lea.vmem %s2, %s516
        %p518 = pneg %p126
        %p519 = pneg %p123
        %p520 = scmp.lt.s32.totalorder %s33, 1
        %s521 = scalar_select %p520, %s33, 1
        %p522 = scmp.lt.s32.totalorder %s34, 0
        %s523 = scalar_select %p522, %s34, 0
        %p524 = scmp.lt.s32.totalorder %s35, 0
        %s525 = scalar_select %p524, %s35, 0
        %s526 = sadd.s32 %s525, %s523
        %s527 = sadd.s32 %s526, %s521
        %s528 = smul.addr %s527, 2
        %s529 = scalar_lea.vmem %s3, %s528
        %p530 = pneg %p156
        %p531 = pneg %p153
        %p532 = pneg %p177
        %p533 = pneg %p174
        %p534 = pneg %p198
        %p535 = pneg %p195
        %p536 = pneg %p219
        %p537 = pneg %p216
        %p538 = pneg %p240
        %p539 = pneg %p237
        %p540 = pneg %p261
        %p541 = pneg %p258
        %p542 = pneg %p282
        %p543 = pneg %p279
        %p544 = pneg %p303
        %p545 = pneg %p300
        %p546 = pneg %p324
        %p547 = pneg %p321
        %p548 = pneg %p345
        %p549 = pneg %p342
        %p550 = pneg %p366
        %p551 = pneg %p363
        %p552 = pneg %p394
        %p553 = pneg %p391
        %s554 = sand.u32 %s381, 1
        %s555 = scalar_lea.sflag [#allocation6], %s554
        %s556 = sand.u32 %s381, 1
        %s557 = smul.addr %s556, 8
        %s558 = scalar_lea.vmem [#allocation5], %s557
        %p559 = scmp.lt.s32.totalorder %s33, 1
        %s560 = scalar_select %p559, %s33, 1
        %p561 = scmp.lt.s32.totalorder %s35, 0
        %s562 = scalar_select %p561, %s35, 0
        %s563 = sadd.s32 %s562, %s560
        %s564 = smul.addr %s563, 8
        %s565 = scalar_lea.vmem %s0, %s564
        %p566 = scmp.lt.s32.totalorder %s33, 1
        %s567 = scalar_select %p566, %s33, 1
        %p568 = scmp.lt.s32.totalorder %s35, 0
        %s569 = scalar_select %p568, %s35, 0
        %s570 = sadd.s32 %s569, %s567
        %s571 = smul.addr %s570, 8
        %s572 = scalar_lea.vmem %s1, %s571
        %p573 = scmp.lt.s32.totalorder %s33, 1
        %s574 = scalar_select %p573, %s33, 1
        %p575 = scmp.lt.s32.totalorder %s34, 0
        %s576 = scalar_select %p575, %s34, 0
        %s577 = sadd.s32 %s576, %s574
        %s578 = smul.addr %s577, 8
        %s579 = scalar_lea.vmem %s2, %s578
        %p580 = scmp.lt.s32.totalorder %s33, 1
        %s581 = scalar_select %p580, %s33, 1
        %p582 = scmp.lt.s32.totalorder %s34, 0
        %s583 = scalar_select %p582, %s34, 0
        %p584 = scmp.lt.s32.totalorder %s35, 0
        %s585 = scalar_select %p584, %s35, 0
        %s586 = sadd.s32 %s585, %s583
        %s587 = sadd.s32 %s586, %s581
        %s588 = smul.addr %s587, 2
        %s589 = scalar_lea.vmem %s3, %s588
        %p590 = scmp.eq.s32.totalorder %s35, 0
        // Predicated region
        $region77: #{tpu_custom_call.1} parent=75 // pred_check
          %p591 = pneg %p590
        $region78: #{tpu_custom_call.1} parent=75 // pred_check_branch
          %593 = sbr.rel (%p591) target = $region80
        $region79: #{tpu_custom_call.1} parent=75 // pred_region
          %vm594 = vcmask 7168
          %595 = vst.msk [vmem:[#allocation2] sm:$0xff] %vm594, -inf
          %596 = vst.msk [vmem:[#allocation2 + $0x8] sm:$0xff] %vm594, -inf
          %597 = vst.msk [vmem:[#allocation2 + $0x10] sm:$0xff] %vm594, -inf
          %598 = vst.msk [vmem:[#allocation2 + $0x18] sm:$0xff] %vm594, -inf
          %599 = vst.msk [vmem:[#allocation3] sm:$0xff] %vm594, 0.0
          %600 = vst.msk [vmem:[#allocation3 + $0x8] sm:$0xff] %vm594, 0.0
          %601 = vst.msk [vmem:[#allocation3 + $0x10] sm:$0xff] %vm594, 0.0
          %602 = vst.msk [vmem:[#allocation3 + $0x18] sm:$0xff] %vm594, 0.0
          %vm603 = vcmask 64512
          %604 = vst.msk [vmem:[#allocation4] sm:$0xff] %vm603, 0.0
          %605 = vst.msk [vmem:[#allocation4 + $0x8] sm:$0xff] %vm603, 0.0
          %606 = vst.msk [vmem:[#allocation4 + $0x10] sm:$0xff] %vm603, 0.0
          %607 = vst.msk [vmem:[#allocation4 + $0x18] sm:$0xff] %vm603, 0.0
        $region80: #{tpu_custom_call.1} parent=75 // pred_fallthru
          _
        %v608 = vld [vmem:[%s579] sm:$0xff]
        %v609 = vmul.f32 %v608, 0.17677669
        %v610 = vld [vmem:[%s572] sm:$0xff]
        %v611 = vld [vmem:[%s565] sm:$0xff]
        %v612 = vld [vmem:[%s589] sm:$0x3]
        %v613 = vunpack.c.0.s8 %v612
        %v614 = vcvt.s32.f32 %v613
        %vm615 = vcmp.eq.f32.partialorder %v614, 0.0
        %v616 = vsel %vm615, -1.767767e+19, 0.0
        %vm617 = vcmask 64512
        %v619 = vsel %vm617, %v609, 0
        %v622 = vsel %vm617, %v610, 0
        %624 = vmatprep.subr.mxu0 0.0
        %625 = vmatpush1.xpose.msra.mxu0 0.0
        %626 = vmatprep.subr.mxu0 0.0
        %627 = vmatpush1.xpose.msra.mxu0 0.0
        %628 = vmatprep.subr.mxu0 0.0
        %629 = vmatpush1.xpose.msra.mxu0 0.0
        %630 = vmatprep.subr.mxu0 0.0
        %631 = vmatpush1.xpose.msra.mxu0 0.0
        %632 = vmatprep.subr.mxu0 0.0
        %633 = vmatpush1.xpose.msra.mxu0 0.0
        %634 = vmatprep.subr.mxu0 0.0
        %635 = vmatpush1.xpose.msra.mxu0 0.0
        %636 = vmatprep.subr.mxu0 0.0
        %637 = vmatpush1.xpose.msra.mxu0 0.0
        %638 = vmatprep.subr.mxu0 0.0
        %639 = vmatpush1.xpose.msra.mxu0 0.0
        %640 = vmatprep.subr.mxu0 0.0
        %641 = vmatpush1.xpose.msra.mxu0 0.0
        %642 = vmatprep.subr.mxu0 0.0
        %643 = vmatpush1.xpose.msra.mxu0 0.0
        %644 = vmatprep.subr.mxu0 0.0
        %645 = vmatpush1.xpose.msra.mxu0 0.0
        %646 = vmatprep.subr.mxu0 0.0
        %647 = vmatpush1.xpose.msra.mxu0 0.0
        %648 = vmatprep.subr.mxu0 0.0
        %649 = vmatpush1.xpose.msra.mxu0 0.0
        %650 = vmatprep.subr.mxu0 0.0
        %651 = vmatpush1.xpose.msra.mxu0 0.0
        %652 = vmatprep.subr.mxu0 0.0
        %653 = vmatpush1.xpose.msra.mxu0 0.0
        %654 = vmatprep.subr.mxu0 0.0
        %655 = vmatpush1.xpose.msra.mxu0 %v622
        %656 = vmatprep.subr.mxu0 0.0
        %657 = vmatpush2.xpose.msra.mxu0 0.0
        %658 = vmatprep.subr.mxu0 0.0
        %659 = vmatpush2.xpose.msra.mxu0 0.0
        %660 = vmatprep.subr.mxu0 0.0
        %661 = vmatpush2.xpose.msra.mxu0 0.0
        %662 = vmatprep.subr.mxu0 0.0
        %663 = vmatpush2.xpose.msra.mxu0 0.0
        %664 = vmatprep.subr.mxu0 0.0
        %665 = vmatpush2.xpose.msra.mxu0 0.0
        %666 = vmatprep.subr.mxu0 0.0
        %667 = vmatpush2.xpose.msra.mxu0 0.0
        %668 = vmatprep.subr.mxu0 0.0
        %669 = vmatpush2.xpose.msra.mxu0 0.0
        %670 = vmatprep.subr.mxu0 0.0
        %671 = vmatpush2.xpose.msra.mxu0 0.0
        %672 = vmatprep.subr.mxu0 0.0
        %673 = vmatpush2.xpose.msra.mxu0 0.0
        %674 = vmatprep.subr.mxu0 0.0
        %675 = vmatpush2.xpose.msra.mxu0 0.0
        %676 = vmatprep.subr.mxu0 0.0
        %677 = vmatpush2.xpose.msra.mxu0 0.0
        %678 = vmatprep.subr.mxu0 0.0
        %679 = vmatpush2.xpose.msra.mxu0 0.0
        %680 = vmatprep.subr.mxu0 0.0
        %681 = vmatpush2.xpose.msra.mxu0 0.0
        %682 = vmatprep.subr.mxu0 0.0
        %683 = vmatpush2.xpose.msra.mxu0 0.0
        %684 = vmatprep.subr.mxu0 0.0
        %685 = vmatpush2.xpose.msra.mxu0 0.0
        %686 = vmatprep.subr.mxu0 0.0
        %687 = vmatpush2.xpose.msra.mxu0 0.0
        %688 = vmatprep.mubr.f32.mxu0 0.0
        %689 = vmatmul.mubr.f32.gmra.mxu0 %v619
        %v690 = vpop.f32.mrf.mxu0
        %v691 = vadd.f32 %v616, %v690
        %v692 = vpop.f32.mrf.mxu0
        %693 = vdwg.mxu0
        %v694 = vld [vmem:[#allocation2] sm:$0xff]
        %v695 = vsel %vm617, %v691, -inf
        %696 = vmax.xlane.f32.xlu0 %v695
        %v697 = vpop.xlane.xlu0 %696
        %v698 = vmax.f32 %v694, %v697
        %v699 = vsub.f32 %v694, %v698
        %v700 = vmul.f32 %v699, 1.442695
        %v701 = vpow.pop %v700
        %703 = vset.pattern.permute.xlu0 0
        %704 = vperm.xlu0 %703, %v698
        %v705 = vpop.permute.xlu0 %704
        %v707 = vsub.f32 %v691, %v705
        %v708 = vmul.f32 %v707, 1.442695
        %v709 = vpow.pop %v708
        %v710 = vld [vmem:[#allocation3] sm:$0xff]
        %v711 = vmul.f32 %v701, %v710
        %v712 = vsel %vm617, %v709, 0.0
        %713 = vadd.xlane.f32.xlu0 %v712
        %v714 = vpop.xlane.xlu0 %713
        %v715 = vadd.f32 %v711, %v714
        %vm716 = vcmask 7168
        %717 = vst.msk [vmem:[#allocation3] sm:$0xff] %vm716, %v715
        %v718 = vld [vmem:[#allocation4] sm:$0xff]
        %720 = vset.pattern.permute.xlu0 0
        %721 = vperm.xlu0 %720, %v701
        %v722 = vpop.permute.xlu0 %721
        %v724 = vmul.f32 %v722, %v718
        %v726 = vsel %vm617, %v709, 0
        %728 = vmatprep.subr.mxu0 0.0
        %729 = vmatpush1.msra.mxu0 0.0
        %730 = vmatprep.subr.mxu0 0.0
        %731 = vmatpush1.msra.mxu0 0.0
        %732 = vmatprep.subr.mxu0 0.0
        %733 = vmatpush1.msra.mxu0 0.0
        %734 = vmatprep.subr.mxu0 0.0
        %735 = vmatpush1.msra.mxu0 0.0
        %736 = vmatprep.subr.mxu0 0.0
        %737 = vmatpush1.msra.mxu0 0.0
        %738 = vmatprep.subr.mxu0 0.0
        %739 = vmatpush1.msra.mxu0 0.0
        %740 = vmatprep.subr.mxu0 0.0
        %741 = vmatpush1.msra.mxu0 0.0
        %742 = vmatprep.subr.mxu0 0.0
        %743 = vmatpush1.msra.mxu0 0.0
        %744 = vmatprep.subr.mxu0 0.0
        %745 = vmatpush1.msra.mxu0 0.0
        %746 = vmatprep.subr.mxu0 0.0
        %747 = vmatpush1.msra.mxu0 0.0
        %748 = vmatprep.subr.mxu0 0.0
        %749 = vmatpush1.msra.mxu0 0.0
        %750 = vmatprep.subr.mxu0 0.0
        %751 = vmatpush1.msra.mxu0 0.0
        %752 = vmatprep.subr.mxu0 0.0
        %753 = vmatpush1.msra.mxu0 0.0
        %754 = vmatprep.subr.mxu0 0.0
        %755 = vmatpush1.msra.mxu0 0.0
        %756 = vmatprep.subr.mxu0 0.0
        %757 = vmatpush1.msra.mxu0 0.0
        %758 = vmatprep.subr.mxu0 0.0
        %759 = vmatpush1.msra.mxu0 %v611
        %760 = vmatprep.subr.mxu0 0.0
        %761 = vmatpush2.msra.mxu0 0.0
        %762 = vmatprep.subr.mxu0 0.0
        %763 = vmatpush2.msra.mxu0 0.0
        %764 = vmatprep.subr.mxu0 0.0
        %765 = vmatpush2.msra.mxu0 0.0
        %766 = vmatprep.subr.mxu0 0.0
        %767 = vmatpush2.msra.mxu0 0.0
        %768 = vmatprep.subr.mxu0 0.0
        %769 = vmatpush2.msra.mxu0 0.0
        %770 = vmatprep.subr.mxu0 0.0
        %771 = vmatpush2.msra.mxu0 0.0
        %772 = vmatprep.subr.mxu0 0.0
        %773 = vmatpush2.msra.mxu0 0.0
        %774 = vmatprep.subr.mxu0 0.0
        %775 = vmatpush2.msra.mxu0 0.0
        %776 = vmatprep.subr.mxu0 0.0
        %777 = vmatpush2.msra.mxu0 0.0
        %778 = vmatprep.subr.mxu0 0.0
        %779 = vmatpush2.msra.mxu0 0.0
        %780 = vmatprep.subr.mxu0 0.0
        %781 = vmatpush2.msra.mxu0 0.0
        %782 = vmatprep.subr.mxu0 0.0
        %783 = vmatpush2.msra.mxu0 0.0
        %784 = vmatprep.subr.mxu0 0.0
        %785 = vmatpush2.msra.mxu0 0.0
        %786 = vmatprep.subr.mxu0 0.0
        %787 = vmatpush2.msra.mxu0 0.0
        %788 = vmatprep.subr.mxu0 0.0
        %789 = vmatpush2.msra.mxu0 0.0
        %790 = vmatprep.subr.mxu0 0.0
        %791 = vmatpush2.msra.mxu0 0.0
        %792 = vmatprep.mubr.f32.mxu0 0.0
        %793 = vmatmul.mubr.f32.gmra.mxu0 %v726
        %v794 = vpop.f32.mrf.mxu0
        %v795 = vadd.f32 0.0, %v794
        %v796 = vpop.f32.mrf.mxu0
        %797 = vdwg.mxu0
        %v798 = vadd.f32 %v724, %v795
        %799 = vst.msk [vmem:[#allocation4] sm:$0xff] %vm617, %v798
        %800 = vst.msk [vmem:[#allocation2] sm:$0xff] %vm716, %v698
        %801 = vrot.lane.b32.xlu0 %v609, 120
        %v802 = vpop.permute.xlu0 %801
        %803 = vrot.lane.b32.xlu0 %v610, 120
        %v804 = vpop.permute.xlu0 %803
        %v805 = vsel %vm617, %v802, 0
        %v807 = vsel %vm617, %v804, 0
        %809 = vmatprep.subr.mxu0 0.0
        %810 = vmatpush1.xpose.msra.mxu0 0.0
        %811 = vmatprep.subr.mxu0 0.0
        %812 = vmatpush1.xpose.msra.mxu0 0.0
        %813 = vmatprep.subr.mxu0 0.0
        %814 = vmatpush1.xpose.msra.mxu0 0.0
        %815 = vmatprep.subr.mxu0 0.0
        %816 = vmatpush1.xpose.msra.mxu0 0.0
        %817 = vmatprep.subr.mxu0 0.0
        %818 = vmatpush1.xpose.msra.mxu0 0.0
        %819 = vmatprep.subr.mxu0 0.0
        %820 = vmatpush1.xpose.msra.mxu0 0.0
        %821 = vmatprep.subr.mxu0 0.0
        %822 = vmatpush1.xpose.msra.mxu0 0.0
        %823 = vmatprep.subr.mxu0 0.0
        %824 = vmatpush1.xpose.msra.mxu0 0.0
        %825 = vmatprep.subr.mxu0 0.0
        %826 = vmatpush1.xpose.msra.mxu0 0.0
        %827 = vmatprep.subr.mxu0 0.0
        %828 = vmatpush1.xpose.msra.mxu0 0.0
        %829 = vmatprep.subr.mxu0 0.0
        %830 = vmatpush1.xpose.msra.mxu0 0.0
        %831 = vmatprep.subr.mxu0 0.0
        %832 = vmatpush1.xpose.msra.mxu0 0.0
        %833 = vmatprep.subr.mxu0 0.0
        %834 = vmatpush1.xpose.msra.mxu0 0.0
        %835 = vmatprep.subr.mxu0 0.0
        %836 = vmatpush1.xpose.msra.mxu0 0.0
        %837 = vmatprep.subr.mxu0 0.0
        %838 = vmatpush1.xpose.msra.mxu0 0.0
        %839 = vmatprep.subr.mxu0 0.0
        %840 = vmatpush1.xpose.msra.mxu0 %v807
        %841 = vmatprep.subr.mxu0 0.0
        %842 = vmatpush2.xpose.msra.mxu0 0.0
        %843 = vmatprep.subr.mxu0 0.0
        %844 = vmatpush2.xpose.msra.mxu0 0.0
        %845 = vmatprep.subr.mxu0 0.0
        %846 = vmatpush2.xpose.msra.mxu0 0.0
        %847 = vmatprep.subr.mxu0 0.0
        %848 = vmatpush2.xpose.msra.mxu0 0.0
        %849 = vmatprep.subr.mxu0 0.0
        %850 = vmatpush2.xpose.msra.mxu0 0.0
        %851 = vmatprep.subr.mxu0 0.0
        %852 = vmatpush2.xpose.msra.mxu0 0.0
        %853 = vmatprep.subr.mxu0 0.0
        %854 = vmatpush2.xpose.msra.mxu0 0.0
        %855 = vmatprep.subr.mxu0 0.0
        %856 = vmatpush2.xpose.msra.mxu0 0.0
        %857 = vmatprep.subr.mxu0 0.0
        %858 = vmatpush2.xpose.msra.mxu0 0.0
        %859 = vmatprep.subr.mxu0 0.0
        %860 = vmatpush2.xpose.msra.mxu0 0.0
        %861 = vmatprep.subr.mxu0 0.0
        %862 = vmatpush2.xpose.msra.mxu0 0.0
        %863 = vmatprep.subr.mxu0 0.0
        %864 = vmatpush2.xpose.msra.mxu0 0.0
        %865 = vmatprep.subr.mxu0 0.0
        %866 = vmatpush2.xpose.msra.mxu0 0.0
        %867 = vmatprep.subr.mxu0 0.0
        %868 = vmatpush2.xpose.msra.mxu0 0.0
        %869 = vmatprep.subr.mxu0 0.0
        %870 = vmatpush2.xpose.msra.mxu0 0.0
        %871 = vmatprep.subr.mxu0 0.0
        %872 = vmatpush2.xpose.msra.mxu0 0.0
        %873 = vmatprep.mubr.f32.mxu0 0.0
        %874 = vmatmul.mubr.f32.gmra.mxu0 %v805
        %v875 = vpop.f32.mrf.mxu0
        %v876 = vadd.f32 %v616, %v875
        %v877 = vpop.f32.mrf.mxu0
        %878 = vdwg.mxu0
        %s879 = scalar_lea.vmem [#allocation2], 8
        %v880 = vld [vmem:[%s879] sm:$0xff]
        %v881 = vsel %vm617, %v876, -inf
        %882 = vmax.xlane.f32.xlu0 %v881
        %v883 = vpop.xlane.xlu0 %882
        %v884 = vmax.f32 %v880, %v883
        %v885 = vsub.f32 %v880, %v884
        %v886 = vmul.f32 %v885, 1.442695
        %v887 = vpow.pop %v886
        %889 = vset.pattern.permute.xlu0 0
        %890 = vperm.xlu0 %889, %v884
        %v891 = vpop.permute.xlu0 %890
        %v893 = vsub.f32 %v876, %v891
        %v894 = vmul.f32 %v893, 1.442695
        %v895 = vpow.pop %v894
        %s896 = scalar_lea.vmem [#allocation3], 8
        %v897 = vld [vmem:[%s896] sm:$0xff]
        %v898 = vmul.f32 %v887, %v897
        %v899 = vsel %vm617, %v895, 0.0
        %900 = vadd.xlane.f32.xlu0 %v899
        %v901 = vpop.xlane.xlu0 %900
        %v902 = vadd.f32 %v898, %v901
        %903 = vst.msk [vmem:[%s896] sm:$0xff] %vm716, %v902
        %s904 = scalar_lea.vmem [#allocation4], 8
        %v905 = vld [vmem:[%s904] sm:$0xff]
        %907 = vset.pattern.permute.xlu0 0
        %908 = vperm.xlu0 %907, %v887
        %v909 = vpop.permute.xlu0 %908
        %v911 = vmul.f32 %v909, %v905
        %913 = vrot.lane.b32.xlu0 %v611, 120
        %v914 = vpop.permute.xlu0 %913
        %v917 = vsel %vm617, %v895, 0
        %919 = vmatprep.subr.mxu0 0.0
        %920 = vmatpush1.msra.mxu0 0.0
        %921 = vmatprep.subr.mxu0 0.0
        %922 = vmatpush1.msra.mxu0 0.0
        %923 = vmatprep.subr.mxu0 0.0
        %924 = vmatpush1.msra.mxu0 0.0
        %925 = vmatprep.subr.mxu0 0.0
        %926 = vmatpush1.msra.mxu0 0.0
        %927 = vmatprep.subr.mxu0 0.0
        %928 = vmatpush1.msra.mxu0 0.0
        %929 = vmatprep.subr.mxu0 0.0
        %930 = vmatpush1.msra.mxu0 0.0
        %931 = vmatprep.subr.mxu0 0.0
        %932 = vmatpush1.msra.mxu0 0.0
        %933 = vmatprep.subr.mxu0 0.0
        %934 = vmatpush1.msra.mxu0 0.0
        %935 = vmatprep.subr.mxu0 0.0
        %936 = vmatpush1.msra.mxu0 0.0
        %937 = vmatprep.subr.mxu0 0.0
        %938 = vmatpush1.msra.mxu0 0.0
        %939 = vmatprep.subr.mxu0 0.0
        %940 = vmatpush1.msra.mxu0 0.0
        %941 = vmatprep.subr.mxu0 0.0
        %942 = vmatpush1.msra.mxu0 0.0
        %943 = vmatprep.subr.mxu0 0.0
        %944 = vmatpush1.msra.mxu0 0.0
        %945 = vmatprep.subr.mxu0 0.0
        %946 = vmatpush1.msra.mxu0 0.0
        %947 = vmatprep.subr.mxu0 0.0
        %948 = vmatpush1.msra.mxu0 0.0
        %949 = vmatprep.subr.mxu0 0.0
        %950 = vmatpush1.msra.mxu0 %v914
        %951 = vmatprep.subr.mxu0 0.0
        %952 = vmatpush2.msra.mxu0 0.0
        %953 = vmatprep.subr.mxu0 0.0
        %954 = vmatpush2.msra.mxu0 0.0
        %955 = vmatprep.subr.mxu0 0.0
        %956 = vmatpush2.msra.mxu0 0.0
        %957 = vmatprep.subr.mxu0 0.0
        %958 = vmatpush2.msra.mxu0 0.0
        %959 = vmatprep.subr.mxu0 0.0
        %960 = vmatpush2.msra.mxu0 0.0
        %961 = vmatprep.subr.mxu0 0.0
        %962 = vmatpush2.msra.mxu0 0.0
        %963 = vmatprep.subr.mxu0 0.0
        %964 = vmatpush2.msra.mxu0 0.0
        %965 = vmatprep.subr.mxu0 0.0
        %966 = vmatpush2.msra.mxu0 0.0
        %967 = vmatprep.subr.mxu0 0.0
        %968 = vmatpush2.msra.mxu0 0.0
        %969 = vmatprep.subr.mxu0 0.0
        %970 = vmatpush2.msra.mxu0 0.0
        %971 = vmatprep.subr.mxu0 0.0
        %972 = vmatpush2.msra.mxu0 0.0
        %973 = vmatprep.subr.mxu0 0.0
        %974 = vmatpush2.msra.mxu0 0.0
        %975 = vmatprep.subr.mxu0 0.0
        %976 = vmatpush2.msra.mxu0 0.0
        %977 = vmatprep.subr.mxu0 0.0
        %978 = vmatpush2.msra.mxu0 0.0
        %979 = vmatprep.subr.mxu0 0.0
        %980 = vmatpush2.msra.mxu0 0.0
        %981 = vmatprep.subr.mxu0 0.0
        %982 = vmatpush2.msra.mxu0 0.0
        %983 = vmatprep.mubr.f32.mxu0 0.0
        %984 = vmatmul.mubr.f32.gmra.mxu0 %v917
        %v985 = vpop.f32.mrf.mxu0
        %v986 = vadd.f32 0.0, %v985
        %v987 = vpop.f32.mrf.mxu0
        %988 = vdwg.mxu0
        %v989 = vadd.f32 %v911, %v986
        %990 = vst.msk [vmem:[%s904] sm:$0xff] %vm617, %v989
        %991 = vst.msk [vmem:[%s879] sm:$0xff] %vm716, %v884
        %992 = vrot.lane.b32.xlu0 %v609, 112
        %v993 = vpop.permute.xlu0 %992
        %994 = vrot.lane.b32.xlu0 %v610, 112
        %v995 = vpop.permute.xlu0 %994
        %v996 = vsel %vm617, %v993, 0
        %v998 = vsel %vm617, %v995, 0
        %1000 = vmatprep.subr.mxu0 0.0
        %1001 = vmatpush1.xpose.msra.mxu0 0.0
        %1002 = vmatprep.subr.mxu0 0.0
        %1003 = vmatpush1.xpose.msra.mxu0 0.0
        %1004 = vmatprep.subr.mxu0 0.0
        %1005 = vmatpush1.xpose.msra.mxu0 0.0
        %1006 = vmatprep.subr.mxu0 0.0
        %1007 = vmatpush1.xpose.msra.mxu0 0.0
        %1008 = vmatprep.subr.mxu0 0.0
        %1009 = vmatpush1.xpose.msra.mxu0 0.0
        %1010 = vmatprep.subr.mxu0 0.0
        %1011 = vmatpush1.xpose.msra.mxu0 0.0
        %1012 = vmatprep.subr.mxu0 0.0
        %1013 = vmatpush1.xpose.msra.mxu0 0.0
        %1014 = vmatprep.subr.mxu0 0.0
        %1015 = vmatpush1.xpose.msra.mxu0 0.0
        %1016 = vmatprep.subr.mxu0 0.0
        %1017 = vmatpush1.xpose.msra.mxu0 0.0
        %1018 = vmatprep.subr.mxu0 0.0
        %1019 = vmatpush1.xpose.msra.mxu0 0.0
        %1020 = vmatprep.subr.mxu0 0.0
        %1021 = vmatpush1.xpose.msra.mxu0 0.0
        %1022 = vmatprep.subr.mxu0 0.0
        %1023 = vmatpush1.xpose.msra.mxu0 0.0
        %1024 = vmatprep.subr.mxu0 0.0
        %1025 = vmatpush1.xpose.msra.mxu0 0.0
        %1026 = vmatprep.subr.mxu0 0.0
        %1027 = vmatpush1.xpose.msra.mxu0 0.0
        %1028 = vmatprep.subr.mxu0 0.0
        %1029 = vmatpush1.xpose.msra.mxu0 0.0
        %1030 = vmatprep.subr.mxu0 0.0
        %1031 = vmatpush1.xpose.msra.mxu0 %v998
        %1032 = vmatprep.subr.mxu0 0.0
        %1033 = vmatpush2.xpose.msra.mxu0 0.0
        %1034 = vmatprep.subr.mxu0 0.0
        %1035 = vmatpush2.xpose.msra.mxu0 0.0
        %1036 = vmatprep.subr.mxu0 0.0
        %1037 = vmatpush2.xpose.msra.mxu0 0.0
        %1038 = vmatprep.subr.mxu0 0.0
        %1039 = vmatpush2.xpose.msra.mxu0 0.0
        %1040 = vmatprep.subr.mxu0 0.0
        %1041 = vmatpush2.xpose.msra.mxu0 0.0
        %1042 = vmatprep.subr.mxu0 0.0
        %1043 = vmatpush2.xpose.msra.mxu0 0.0
        %1044 = vmatprep.subr.mxu0 0.0
        %1045 = vmatpush2.xpose.msra.mxu0 0.0
        %1046 = vmatprep.subr.mxu0 0.0
        %1047 = vmatpush2.xpose.msra.mxu0 0.0
        %1048 = vmatprep.subr.mxu0 0.0
        %1049 = vmatpush2.xpose.msra.mxu0 0.0
        %1050 = vmatprep.subr.mxu0 0.0
        %1051 = vmatpush2.xpose.msra.mxu0 0.0
        %1052 = vmatprep.subr.mxu0 0.0
        %1053 = vmatpush2.xpose.msra.mxu0 0.0
        %1054 = vmatprep.subr.mxu0 0.0
        %1055 = vmatpush2.xpose.msra.mxu0 0.0
        %1056 = vmatprep.subr.mxu0 0.0
        %1057 = vmatpush2.xpose.msra.mxu0 0.0
        %1058 = vmatprep.subr.mxu0 0.0
        %1059 = vmatpush2.xpose.msra.mxu0 0.0
        %1060 = vmatprep.subr.mxu0 0.0
        %1061 = vmatpush2.xpose.msra.mxu0 0.0
        %1062 = vmatprep.subr.mxu0 0.0
        %1063 = vmatpush2.xpose.msra.mxu0 0.0
        %1064 = vmatprep.mubr.f32.mxu0 0.0
        %1065 = vmatmul.mubr.f32.gmra.mxu0 %v996
        %v1066 = vpop.f32.mrf.mxu0
        %v1067 = vadd.f32 %v616, %v1066
        %v1068 = vpop.f32.mrf.mxu0
        %1069 = vdwg.mxu0
        %s1070 = scalar_lea.vmem [#allocation2], 16
        %v1071 = vld [vmem:[%s1070] sm:$0xff]
        %v1072 = vsel %vm617, %v1067, -inf
        %1073 = vmax.xlane.f32.xlu0 %v1072
        %v1074 = vpop.xlane.xlu0 %1073
        %v1075 = vmax.f32 %v1071, %v1074
        %v1076 = vsub.f32 %v1071, %v1075
        %v1077 = vmul.f32 %v1076, 1.442695
        %v1078 = vpow.pop %v1077
        %1080 = vset.pattern.permute.xlu0 0
        %1081 = vperm.xlu0 %1080, %v1075
        %v1082 = vpop.permute.xlu0 %1081
        %v1084 = vsub.f32 %v1067, %v1082
        %v1085 = vmul.f32 %v1084, 1.442695
        %v1086 = vpow.pop %v1085
        %s1087 = scalar_lea.vmem [#allocation3], 16
        %v1088 = vld [vmem:[%s1087] sm:$0xff]
        %v1089 = vmul.f32 %v1078, %v1088
        %v1090 = vsel %vm617, %v1086, 0.0
        %1091 = vadd.xlane.f32.xlu0 %v1090
        %v1092 = vpop.xlane.xlu0 %1091
        %v1093 = vadd.f32 %v1089, %v1092
        %1094 = vst.msk [vmem:[%s1087] sm:$0xff] %vm716, %v1093
        %s1095 = scalar_lea.vmem [#allocation4], 16
        %v1096 = vld [vmem:[%s1095] sm:$0xff]
        %1098 = vset.pattern.permute.xlu0 0
        %1099 = vperm.xlu0 %1098, %v1078
        %v1100 = vpop.permute.xlu0 %1099
        %v1102 = vmul.f32 %v1100, %v1096
        %1103 = vrot.lane.b32.xlu0 %v611, 112
        %v1104 = vpop.permute.xlu0 %1103
        %v1107 = vsel %vm617, %v1086, 0
        %1109 = vmatprep.subr.mxu0 0.0
        %1110 = vmatpush1.msra.mxu0 0.0
        %1111 = vmatprep.subr.mxu0 0.0
        %1112 = vmatpush1.msra.mxu0 0.0
        %1113 = vmatprep.subr.mxu0 0.0
        %1114 = vmatpush1.msra.mxu0 0.0
        %1115 = vmatprep.subr.mxu0 0.0
        %1116 = vmatpush1.msra.mxu0 0.0
        %1117 = vmatprep.subr.mxu0 0.0
        %1118 = vmatpush1.msra.mxu0 0.0
        %1119 = vmatprep.subr.mxu0 0.0
        %1120 = vmatpush1.msra.mxu0 0.0
        %1121 = vmatprep.subr.mxu0 0.0
        %1122 = vmatpush1.msra.mxu0 0.0
        %1123 = vmatprep.subr.mxu0 0.0
        %1124 = vmatpush1.msra.mxu0 0.0
        %1125 = vmatprep.subr.mxu0 0.0
        %1126 = vmatpush1.msra.mxu0 0.0
        %1127 = vmatprep.subr.mxu0 0.0
        %1128 = vmatpush1.msra.mxu0 0.0
        %1129 = vmatprep.subr.mxu0 0.0
        %1130 = vmatpush1.msra.mxu0 0.0
        %1131 = vmatprep.subr.mxu0 0.0
        %1132 = vmatpush1.msra.mxu0 0.0
        %1133 = vmatprep.subr.mxu0 0.0
        %1134 = vmatpush1.msra.mxu0 0.0
        %1135 = vmatprep.subr.mxu0 0.0
        %1136 = vmatpush1.msra.mxu0 0.0
        %1137 = vmatprep.subr.mxu0 0.0
        %1138 = vmatpush1.msra.mxu0 0.0
        %1139 = vmatprep.subr.mxu0 0.0
        %1140 = vmatpush1.msra.mxu0 %v1104
        %1141 = vmatprep.subr.mxu0 0.0
        %1142 = vmatpush2.msra.mxu0 0.0
        %1143 = vmatprep.subr.mxu0 0.0
        %1144 = vmatpush2.msra.mxu0 0.0
        %1145 = vmatprep.subr.mxu0 0.0
        %1146 = vmatpush2.msra.mxu0 0.0
        %1147 = vmatprep.subr.mxu0 0.0
        %1148 = vmatpush2.msra.mxu0 0.0
        %1149 = vmatprep.subr.mxu0 0.0
        %1150 = vmatpush2.msra.mxu0 0.0
        %1151 = vmatprep.subr.mxu0 0.0
        %1152 = vmatpush2.msra.mxu0 0.0
        %1153 = vmatprep.subr.mxu0 0.0
        %1154 = vmatpush2.msra.mxu0 0.0
        %1155 = vmatprep.subr.mxu0 0.0
        %1156 = vmatpush2.msra.mxu0 0.0
        %1157 = vmatprep.subr.mxu0 0.0
        %1158 = vmatpush2.msra.mxu0 0.0
        %1159 = vmatprep.subr.mxu0 0.0
        %1160 = vmatpush2.msra.mxu0 0.0
        %1161 = vmatprep.subr.mxu0 0.0
        %1162 = vmatpush2.msra.mxu0 0.0
        %1163 = vmatprep.subr.mxu0 0.0
        %1164 = vmatpush2.msra.mxu0 0.0
        %1165 = vmatprep.subr.mxu0 0.0
        %1166 = vmatpush2.msra.mxu0 0.0
        %1167 = vmatprep.subr.mxu0 0.0
        %1168 = vmatpush2.msra.mxu0 0.0
        %1169 = vmatprep.subr.mxu0 0.0
        %1170 = vmatpush2.msra.mxu0 0.0
        %1171 = vmatprep.subr.mxu0 0.0
        %1172 = vmatpush2.msra.mxu0 0.0
        %1173 = vmatprep.mubr.f32.mxu0 0.0
        %1174 = vmatmul.mubr.f32.gmra.mxu0 %v1107
        %v1175 = vpop.f32.mrf.mxu0
        %v1176 = vadd.f32 0.0, %v1175
        %v1177 = vpop.f32.mrf.mxu0
        %1178 = vdwg.mxu0
        %v1179 = vadd.f32 %v1102, %v1176
        %1180 = vst.msk [vmem:[%s1095] sm:$0xff] %vm617, %v1179
        %1181 = vst.msk [vmem:[%s1070] sm:$0xff] %vm716, %v1075
        %1182 = vrot.lane.b32.xlu0 %v609, 104
        %v1183 = vpop.permute.xlu0 %1182
        %1184 = vrot.lane.b32.xlu0 %v610, 104
        %v1185 = vpop.permute.xlu0 %1184
        %v1186 = vsel %vm617, %v1183, 0
        %v1188 = vsel %vm617, %v1185, 0
        %1190 = vmatprep.subr.mxu0 0.0
        %1191 = vmatpush1.xpose.msra.mxu0 0.0
        %1192 = vmatprep.subr.mxu0 0.0
        %1193 = vmatpush1.xpose.msra.mxu0 0.0
        %1194 = vmatprep.subr.mxu0 0.0
        %1195 = vmatpush1.xpose.msra.mxu0 0.0
        %1196 = vmatprep.subr.mxu0 0.0
        %1197 = vmatpush1.xpose.msra.mxu0 0.0
        %1198 = vmatprep.subr.mxu0 0.0
        %1199 = vmatpush1.xpose.msra.mxu0 0.0
        %1200 = vmatprep.subr.mxu0 0.0
        %1201 = vmatpush1.xpose.msra.mxu0 0.0
        %1202 = vmatprep.subr.mxu0 0.0
        %1203 = vmatpush1.xpose.msra.mxu0 0.0
        %1204 = vmatprep.subr.mxu0 0.0
        %1205 = vmatpush1.xpose.msra.mxu0 0.0
        %1206 = vmatprep.subr.mxu0 0.0
        %1207 = vmatpush1.xpose.msra.mxu0 0.0
        %1208 = vmatprep.subr.mxu0 0.0
        %1209 = vmatpush1.xpose.msra.mxu0 0.0
        %1210 = vmatprep.subr.mxu0 0.0
        %1211 = vmatpush1.xpose.msra.mxu0 0.0
        %1212 = vmatprep.subr.mxu0 0.0
        %1213 = vmatpush1.xpose.msra.mxu0 0.0
        %1214 = vmatprep.subr.mxu0 0.0
        %1215 = vmatpush1.xpose.msra.mxu0 0.0
        %1216 = vmatprep.subr.mxu0 0.0
        %1217 = vmatpush1.xpose.msra.mxu0 0.0
        %1218 = vmatprep.subr.mxu0 0.0
        %1219 = vmatpush1.xpose.msra.mxu0 0.0
        %1220 = vmatprep.subr.mxu0 0.0
        %1221 = vmatpush1.xpose.msra.mxu0 %v1188
        %1222 = vmatprep.subr.mxu0 0.0
        %1223 = vmatpush2.xpose.msra.mxu0 0.0
        %1224 = vmatprep.subr.mxu0 0.0
        %1225 = vmatpush2.xpose.msra.mxu0 0.0
        %1226 = vmatprep.subr.mxu0 0.0
        %1227 = vmatpush2.xpose.msra.mxu0 0.0
        %1228 = vmatprep.subr.mxu0 0.0
        %1229 = vmatpush2.xpose.msra.mxu0 0.0
        %1230 = vmatprep.subr.mxu0 0.0
        %1231 = vmatpush2.xpose.msra.mxu0 0.0
        %1232 = vmatprep.subr.mxu0 0.0
        %1233 = vmatpush2.xpose.msra.mxu0 0.0
        %1234 = vmatprep.subr.mxu0 0.0
        %1235 = vmatpush2.xpose.msra.mxu0 0.0
        %1236 = vmatprep.subr.mxu0 0.0
        %1237 = vmatpush2.xpose.msra.mxu0 0.0
        %1238 = vmatprep.subr.mxu0 0.0
        %1239 = vmatpush2.xpose.msra.mxu0 0.0
        %1240 = vmatprep.subr.mxu0 0.0
        %1241 = vmatpush2.xpose.msra.mxu0 0.0
        %1242 = vmatprep.subr.mxu0 0.0
        %1243 = vmatpush2.xpose.msra.mxu0 0.0
        %1244 = vmatprep.subr.mxu0 0.0
        %1245 = vmatpush2.xpose.msra.mxu0 0.0
        %1246 = vmatprep.subr.mxu0 0.0
        %1247 = vmatpush2.xpose.msra.mxu0 0.0
        %1248 = vmatprep.subr.mxu0 0.0
        %1249 = vmatpush2.xpose.msra.mxu0 0.0
        %1250 = vmatprep.subr.mxu0 0.0
        %1251 = vmatpush2.xpose.msra.mxu0 0.0
        %1252 = vmatprep.subr.mxu0 0.0
        %1253 = vmatpush2.xpose.msra.mxu0 0.0
        %1254 = vmatprep.mubr.f32.mxu0 0.0
        %1255 = vmatmul.mubr.f32.gmra.mxu0 %v1186
        %v1256 = vpop.f32.mrf.mxu0
        %v1257 = vadd.f32 %v616, %v1256
        %v1258 = vpop.f32.mrf.mxu0
        %1259 = vdwg.mxu0
        %s1260 = scalar_lea.vmem [#allocation2], 24
        %v1261 = vld [vmem:[%s1260] sm:$0xff]
        %v1262 = vsel %vm617, %v1257, -inf
        %1263 = vmax.xlane.f32.xlu0 %v1262
        %v1264 = vpop.xlane.xlu0 %1263
        %v1265 = vmax.f32 %v1261, %v1264
        %v1266 = vsub.f32 %v1261, %v1265
        %v1267 = vmul.f32 %v1266, 1.442695
        %v1268 = vpow.pop %v1267
        %1270 = vset.pattern.permute.xlu0 0
        %1271 = vperm.xlu0 %1270, %v1265
        %v1272 = vpop.permute.xlu0 %1271
        %v1274 = vsub.f32 %v1257, %v1272
        %v1275 = vmul.f32 %v1274, 1.442695
        %v1276 = vpow.pop %v1275
        %s1277 = scalar_lea.vmem [#allocation3], 24
        %v1278 = vld [vmem:[%s1277] sm:$0xff]
        %v1279 = vmul.f32 %v1268, %v1278
        %v1280 = vsel %vm617, %v1276, 0.0
        %1281 = vadd.xlane.f32.xlu0 %v1280
        %v1282 = vpop.xlane.xlu0 %1281
        %v1283 = vadd.f32 %v1279, %v1282
        %1284 = vst.msk [vmem:[%s1277] sm:$0xff] %vm716, %v1283
        %s1285 = scalar_lea.vmem [#allocation4], 24
        %v1286 = vld [vmem:[%s1285] sm:$0xff]
        %1288 = vset.pattern.permute.xlu0 0
        %1289 = vperm.xlu0 %1288, %v1268
        %v1290 = vpop.permute.xlu0 %1289
        %v1292 = vmul.f32 %v1290, %v1286
        %1293 = vrot.lane.b32.xlu0 %v611, 104
        %v1294 = vpop.permute.xlu0 %1293
        %v1297 = vsel %vm617, %v1276, 0
        %1299 = vmatprep.subr.mxu0 0.0
        %1300 = vmatpush1.msra.mxu0 0.0
        %1301 = vmatprep.subr.mxu0 0.0
        %1302 = vmatpush1.msra.mxu0 0.0
        %1303 = vmatprep.subr.mxu0 0.0
        %1304 = vmatpush1.msra.mxu0 0.0
        %1305 = vmatprep.subr.mxu0 0.0
        %1306 = vmatpush1.msra.mxu0 0.0
        %1307 = vmatprep.subr.mxu0 0.0
        %1308 = vmatpush1.msra.mxu0 0.0
        %1309 = vmatprep.subr.mxu0 0.0
        %1310 = vmatpush1.msra.mxu0 0.0
        %1311 = vmatprep.subr.mxu0 0.0
        %1312 = vmatpush1.msra.mxu0 0.0
        %1313 = vmatprep.subr.mxu0 0.0
        %1314 = vmatpush1.msra.mxu0 0.0
        %1315 = vmatprep.subr.mxu0 0.0
        %1316 = vmatpush1.msra.mxu0 0.0
        %1317 = vmatprep.subr.mxu0 0.0
        %1318 = vmatpush1.msra.mxu0 0.0
        %1319 = vmatprep.subr.mxu0 0.0
        %1320 = vmatpush1.msra.mxu0 0.0
        %1321 = vmatprep.subr.mxu0 0.0
        %1322 = vmatpush1.msra.mxu0 0.0
        %1323 = vmatprep.subr.mxu0 0.0
        %1324 = vmatpush1.msra.mxu0 0.0
        %1325 = vmatprep.subr.mxu0 0.0
        %1326 = vmatpush1.msra.mxu0 0.0
        %1327 = vmatprep.subr.mxu0 0.0
        %1328 = vmatpush1.msra.mxu0 0.0
        %1329 = vmatprep.subr.mxu0 0.0
        %1330 = vmatpush1.msra.mxu0 %v1294
        %1331 = vmatprep.subr.mxu0 0.0
        %1332 = vmatpush2.msra.mxu0 0.0
        %1333 = vmatprep.subr.mxu0 0.0
        %1334 = vmatpush2.msra.mxu0 0.0
        %1335 = vmatprep.subr.mxu0 0.0
        %1336 = vmatpush2.msra.mxu0 0.0
        %1337 = vmatprep.subr.mxu0 0.0
        %1338 = vmatpush2.msra.mxu0 0.0
        %1339 = vmatprep.subr.mxu0 0.0
        %1340 = vmatpush2.msra.mxu0 0.0
        %1341 = vmatprep.subr.mxu0 0.0
        %1342 = vmatpush2.msra.mxu0 0.0
        %1343 = vmatprep.subr.mxu0 0.0
        %1344 = vmatpush2.msra.mxu0 0.0
        %1345 = vmatprep.subr.mxu0 0.0
        %1346 = vmatpush2.msra.mxu0 0.0
        %1347 = vmatprep.subr.mxu0 0.0
        %1348 = vmatpush2.msra.mxu0 0.0
        %1349 = vmatprep.subr.mxu0 0.0
        %1350 = vmatpush2.msra.mxu0 0.0
        %1351 = vmatprep.subr.mxu0 0.0
        %1352 = vmatpush2.msra.mxu0 0.0
        %1353 = vmatprep.subr.mxu0 0.0
        %1354 = vmatpush2.msra.mxu0 0.0
        %1355 = vmatprep.subr.mxu0 0.0
        %1356 = vmatpush2.msra.mxu0 0.0
        %1357 = vmatprep.subr.mxu0 0.0
        %1358 = vmatpush2.msra.mxu0 0.0
        %1359 = vmatprep.subr.mxu0 0.0
        %1360 = vmatpush2.msra.mxu0 0.0
        %1361 = vmatprep.subr.mxu0 0.0
        %1362 = vmatpush2.msra.mxu0 0.0
        %1363 = vmatprep.mubr.f32.mxu0 0.0
        %1364 = vmatmul.mubr.f32.gmra.mxu0 %v1297
        %v1365 = vpop.f32.mrf.mxu0
        %v1366 = vadd.f32 0.0, %v1365
        %v1367 = vpop.f32.mrf.mxu0
        %1368 = vdwg.mxu0
        %v1369 = vadd.f32 %v1292, %v1366
        %1370 = vst.msk [vmem:[%s1285] sm:$0xff] %vm617, %v1369
        %1371 = vst.msk [vmem:[%s1260] sm:$0xff] %vm716, %v1265
        // Predicated region
        $region81: #{tpu_custom_call.1} parent=75 // pred_check
          %p1372 = pneg %p590
        $region82: #{tpu_custom_call.1} parent=75 // pred_check_branch
          %1374 = sbr.rel (%p1372) target = $region84
        $region83: #{tpu_custom_call.1} parent=75 // pred_region
          %v1375 = vld [vmem:[%s4] sm:$0xff]
          %v1376 = vld [vmem:[%s4 + $0x8] sm:$0xff]
          %v1377 = vld [vmem:[%s4 + $0x10] sm:$0xff]
          %v1378 = vld [vmem:[%s4 + $0x18] sm:$0xff]
          %v1379 = vld [vmem:[#allocation4] sm:$0xff]
          %v1380 = vld [vmem:[#allocation3] sm:$0xff]
          %v1381 = vrcp.pop %v1380
          %1383 = vset.pattern.permute.xlu0 0
          %1384 = vperm.xlu0 %1383, %v1381
          %v1385 = vpop.permute.xlu0 %1384
          %v1387 = vmul.f32 %v1379, %v1385
          %v1388 = vld [vmem:[%s904] sm:$0xff]
          %v1389 = vld [vmem:[%s896] sm:$0xff]
          %v1390 = vrcp.pop %v1389
          %1392 = vset.pattern.permute.xlu0 0
          %1393 = vperm.xlu0 %1392, %v1390
          %v1394 = vpop.permute.xlu0 %1393
          %v1396 = vmul.f32 %v1388, %v1394
          %v1398 = vsel %vm617, %v1396, 0
          %1400 = vmatprep.subr.mxu0 0.0
          %1401 = vmatpush1.msra.mxu0 0.0
          %1402 = vmatprep.subr.mxu0 0.0
          %1403 = vmatpush1.msra.mxu0 0.0
          %1404 = vmatprep.subr.mxu0 0.0
          %1405 = vmatpush1.msra.mxu0 0.0
          %1406 = vmatprep.subr.mxu0 0.0
          %1407 = vmatpush1.msra.mxu0 0.0
          %1408 = vmatprep.subr.mxu0 0.0
          %1409 = vmatpush1.msra.mxu0 0.0
          %1410 = vmatprep.subr.mxu0 0.0
          %1411 = vmatpush1.msra.mxu0 0.0
          %1412 = vmatprep.subr.mxu0 0.0
          %1413 = vmatpush1.msra.mxu0 0.0
          %1414 = vmatprep.subr.mxu0 0.0
          %1415 = vmatpush1.msra.mxu0 0.0
          %1416 = vmatprep.subr.mxu0 0.0
          %1417 = vmatpush1.msra.mxu0 0.0
          %1418 = vmatprep.subr.mxu0 0.0
          %1419 = vmatpush1.msra.mxu0 0.0
          %1420 = vmatprep.subr.mxu0 0.0
          %1421 = vmatpush1.msra.mxu0 0.0
          %1422 = vmatprep.subr.mxu0 0.0
          %1423 = vmatpush1.msra.mxu0 0.0
          %1424 = vmatprep.subr.mxu0 0.0
          %1425 = vmatpush1.msra.mxu0 0.0
          %1426 = vmatprep.subr.mxu0 0.0
          %1427 = vmatpush1.msra.mxu0 0.0
          %1428 = vmatprep.subr.mxu0 0.0
          %1429 = vmatpush1.msra.mxu0 0.0
          %1430 = vmatprep.subr.mxu0 0.0
          %1431 = vmatpush1.msra.mxu0 %v1376
          %1432 = vmatprep.subr.mxu0 0.0
          %1433 = vmatpush2.msra.mxu0 0.0
          %1434 = vmatprep.subr.mxu0 0.0
          %1435 = vmatpush2.msra.mxu0 0.0
          %1436 = vmatprep.subr.mxu0 0.0
          %1437 = vmatpush2.msra.mxu0 0.0
          %1438 = vmatprep.subr.mxu0 0.0
          %1439 = vmatpush2.msra.mxu0 0.0
          %1440 = vmatprep.subr.mxu0 0.0
          %1441 = vmatpush2.msra.mxu0 0.0
          %1442 = vmatprep.subr.mxu0 0.0
          %1443 = vmatpush2.msra.mxu0 0.0
          %1444 = vmatprep.subr.mxu0 0.0
          %1445 = vmatpush2.msra.mxu0 0.0
          %1446 = vmatprep.subr.mxu0 0.0
          %1447 = vmatpush2.msra.mxu0 0.0
          %1448 = vmatprep.subr.mxu0 0.0
          %1449 = vmatpush2.msra.mxu0 0.0
          %1450 = vmatprep.subr.mxu0 0.0
          %1451 = vmatpush2.msra.mxu0 0.0
          %1452 = vmatprep.subr.mxu0 0.0
          %1453 = vmatpush2.msra.mxu0 0.0
          %1454 = vmatprep.subr.mxu0 0.0
          %1455 = vmatpush2.msra.mxu0 0.0
          %1456 = vmatprep.subr.mxu0 0.0
          %1457 = vmatpush2.msra.mxu0 0.0
          %1458 = vmatprep.subr.mxu0 0.0
          %1459 = vmatpush2.msra.mxu0 0.0
          %1460 = vmatprep.subr.mxu0 0.0
          %1461 = vmatpush2.msra.mxu0 0.0
          %1462 = vmatprep.subr.mxu0 0.0
          %1463 = vmatpush2.msra.mxu0 0.0
          %1464 = vmatprep.mubr.f32.mxu0 0.0
          %1465 = vmatmul.mubr.f32.gmra.mxu0 %v1398
          %v1466 = vpop.f32.mrf.mxu0
          %v1467 = vadd.f32 0.0, %v1466
          %v1468 = vpop.f32.mrf.mxu0
          %1469 = vdwg.mxu0
          %v1471 = vsel %vm617, %v1387, 0
          %1473 = vmatprep.subr.mxu0 0.0
          %1474 = vmatpush1.msra.mxu0 0.0
          %1475 = vmatprep.subr.mxu0 0.0
          %1476 = vmatpush1.msra.mxu0 0.0
          %1477 = vmatprep.subr.mxu0 0.0
          %1478 = vmatpush1.msra.mxu0 0.0
          %1479 = vmatprep.subr.mxu0 0.0
          %1480 = vmatpush1.msra.mxu0 0.0
          %1481 = vmatprep.subr.mxu0 0.0
          %1482 = vmatpush1.msra.mxu0 0.0
          %1483 = vmatprep.subr.mxu0 0.0
          %1484 = vmatpush1.msra.mxu0 0.0
          %1485 = vmatprep.subr.mxu0 0.0
          %1486 = vmatpush1.msra.mxu0 0.0
          %1487 = vmatprep.subr.mxu0 0.0
          %1488 = vmatpush1.msra.mxu0 0.0
          %1489 = vmatprep.subr.mxu0 0.0
          %1490 = vmatpush1.msra.mxu0 0.0
          %1491 = vmatprep.subr.mxu0 0.0
          %1492 = vmatpush1.msra.mxu0 0.0
          %1493 = vmatprep.subr.mxu0 0.0
          %1494 = vmatpush1.msra.mxu0 0.0
          %1495 = vmatprep.subr.mxu0 0.0
          %1496 = vmatpush1.msra.mxu0 0.0
          %1497 = vmatprep.subr.mxu0 0.0
          %1498 = vmatpush1.msra.mxu0 0.0
          %1499 = vmatprep.subr.mxu0 0.0
          %1500 = vmatpush1.msra.mxu0 0.0
          %1501 = vmatprep.subr.mxu0 0.0
          %1502 = vmatpush1.msra.mxu0 0.0
          %1503 = vmatprep.subr.mxu0 0.0
          %1504 = vmatpush1.msra.mxu0 %v1375
          %1505 = vmatprep.subr.mxu0 0.0
          %1506 = vmatpush2.msra.mxu0 0.0
          %1507 = vmatprep.subr.mxu0 0.0
          %1508 = vmatpush2.msra.mxu0 0.0
          %1509 = vmatprep.subr.mxu0 0.0
          %1510 = vmatpush2.msra.mxu0 0.0
          %1511 = vmatprep.subr.mxu0 0.0
          %1512 = vmatpush2.msra.mxu0 0.0
          %1513 = vmatprep.subr.mxu0 0.0
          %1514 = vmatpush2.msra.mxu0 0.0
          %1515 = vmatprep.subr.mxu0 0.0
          %1516 = vmatpush2.msra.mxu0 0.0
          %1517 = vmatprep.subr.mxu0 0.0
          %1518 = vmatpush2.msra.mxu0 0.0
          %1519 = vmatprep.subr.mxu0 0.0
          %1520 = vmatpush2.msra.mxu0 0.0
          %1521 = vmatprep.subr.mxu0 0.0
          %1522 = vmatpush2.msra.mxu0 0.0
          %1523 = vmatprep.subr.mxu0 0.0
          %1524 = vmatpush2.msra.mxu0 0.0
          %1525 = vmatprep.subr.mxu0 0.0
          %1526 = vmatpush2.msra.mxu0 0.0
          %1527 = vmatprep.subr.mxu0 0.0
          %1528 = vmatpush2.msra.mxu0 0.0
          %1529 = vmatprep.subr.mxu0 0.0
          %1530 = vmatpush2.msra.mxu0 0.0
          %1531 = vmatprep.subr.mxu0 0.0
          %1532 = vmatpush2.msra.mxu0 0.0
          %1533 = vmatprep.subr.mxu0 0.0
          %1534 = vmatpush2.msra.mxu0 0.0
          %1535 = vmatprep.subr.mxu0 0.0
          %1536 = vmatpush2.msra.mxu0 0.0
          %1537 = vmatprep.mubr.f32.mxu0 0.0
          %1538 = vmatmul.mubr.f32.gmra.mxu0 %v1471
          %v1539 = vpop.f32.mrf.mxu0
          %v1540 = vadd.f32 %v1467, %v1539
          %v1541 = vpop.f32.mrf.mxu0
          %1542 = vdwg.mxu0
          %v1543 = vld [vmem:[%s1095] sm:$0xff]
          %v1544 = vld [vmem:[%s1087] sm:$0xff]
          %v1545 = vrcp.pop %v1544
          %1547 = vset.pattern.permute.xlu0 0
          %1548 = vperm.xlu0 %1547, %v1545
          %v1549 = vpop.permute.xlu0 %1548
          %v1551 = vmul.f32 %v1543, %v1549
          %v1553 = vsel %vm617, %v1551, 0
          %1555 = vmatprep.subr.mxu0 0.0
          %1556 = vmatpush1.msra.mxu0 0.0
          %1557 = vmatprep.subr.mxu0 0.0
          %1558 = vmatpush1.msra.mxu0 0.0
          %1559 = vmatprep.subr.mxu0 0.0
          %1560 = vmatpush1.msra.mxu0 0.0
          %1561 = vmatprep.subr.mxu0 0.0
          %1562 = vmatpush1.msra.mxu0 0.0
          %1563 = vmatprep.subr.mxu0 0.0
          %1564 = vmatpush1.msra.mxu0 0.0
          %1565 = vmatprep.subr.mxu0 0.0
          %1566 = vmatpush1.msra.mxu0 0.0
          %1567 = vmatprep.subr.mxu0 0.0
          %1568 = vmatpush1.msra.mxu0 0.0
          %1569 = vmatprep.subr.mxu0 0.0
          %1570 = vmatpush1.msra.mxu0 0.0
          %1571 = vmatprep.subr.mxu0 0.0
          %1572 = vmatpush1.msra.mxu0 0.0
          %1573 = vmatprep.subr.mxu0 0.0
          %1574 = vmatpush1.msra.mxu0 0.0
          %1575 = vmatprep.subr.mxu0 0.0
          %1576 = vmatpush1.msra.mxu0 0.0
          %1577 = vmatprep.subr.mxu0 0.0
          %1578 = vmatpush1.msra.mxu0 0.0
          %1579 = vmatprep.subr.mxu0 0.0
          %1580 = vmatpush1.msra.mxu0 0.0
          %1581 = vmatprep.subr.mxu0 0.0
          %1582 = vmatpush1.msra.mxu0 0.0
          %1583 = vmatprep.subr.mxu0 0.0
          %1584 = vmatpush1.msra.mxu0 0.0
          %1585 = vmatprep.subr.mxu0 0.0
          %1586 = vmatpush1.msra.mxu0 %v1377
          %1587 = vmatprep.subr.mxu0 0.0
          %1588 = vmatpush2.msra.mxu0 0.0
          %1589 = vmatprep.subr.mxu0 0.0
          %1590 = vmatpush2.msra.mxu0 0.0
          %1591 = vmatprep.subr.mxu0 0.0
          %1592 = vmatpush2.msra.mxu0 0.0
          %1593 = vmatprep.subr.mxu0 0.0
          %1594 = vmatpush2.msra.mxu0 0.0
          %1595 = vmatprep.subr.mxu0 0.0
          %1596 = vmatpush2.msra.mxu0 0.0
          %1597 = vmatprep.subr.mxu0 0.0
          %1598 = vmatpush2.msra.mxu0 0.0
          %1599 = vmatprep.subr.mxu0 0.0
          %1600 = vmatpush2.msra.mxu0 0.0
          %1601 = vmatprep.subr.mxu0 0.0
          %1602 = vmatpush2.msra.mxu0 0.0
          %1603 = vmatprep.subr.mxu0 0.0
          %1604 = vmatpush2.msra.mxu0 0.0
          %1605 = vmatprep.subr.mxu0 0.0
          %1606 = vmatpush2.msra.mxu0 0.0
          %1607 = vmatprep.subr.mxu0 0.0
          %1608 = vmatpush2.msra.mxu0 0.0
          %1609 = vmatprep.subr.mxu0 0.0
          %1610 = vmatpush2.msra.mxu0 0.0
          %1611 = vmatprep.subr.mxu0 0.0
          %1612 = vmatpush2.msra.mxu0 0.0
          %1613 = vmatprep.subr.mxu0 0.0
          %1614 = vmatpush2.msra.mxu0 0.0
          %1615 = vmatprep.subr.mxu0 0.0
          %1616 = vmatpush2.msra.mxu0 0.0
          %1617 = vmatprep.subr.mxu0 0.0
          %1618 = vmatpush2.msra.mxu0 0.0
          %1619 = vmatprep.mubr.f32.mxu0 0.0
          %1620 = vmatmul.mubr.f32.gmra.mxu0 %v1553
          %v1621 = vpop.f32.mrf.mxu0
          %v1622 = vadd.f32 0.0, %v1621
          %v1623 = vpop.f32.mrf.mxu0
          %1624 = vdwg.mxu0
          %v1625 = vadd.f32 %v1540, %v1622
          %v1626 = vld [vmem:[%s1285] sm:$0xff]
          %v1627 = vld [vmem:[%s1277] sm:$0xff]
          %v1628 = vrcp.pop %v1627
          %1630 = vset.pattern.permute.xlu0 0
          %1631 = vperm.xlu0 %1630, %v1628
          %v1632 = vpop.permute.xlu0 %1631
          %v1634 = vmul.f32 %v1626, %v1632
          %v1636 = vsel %vm617, %v1634, 0
          %1638 = vmatprep.subr.mxu0 0.0
          %1639 = vmatpush1.msra.mxu0 0.0
          %1640 = vmatprep.subr.mxu0 0.0
          %1641 = vmatpush1.msra.mxu0 0.0
          %1642 = vmatprep.subr.mxu0 0.0
          %1643 = vmatpush1.msra.mxu0 0.0
          %1644 = vmatprep.subr.mxu0 0.0
          %1645 = vmatpush1.msra.mxu0 0.0
          %1646 = vmatprep.subr.mxu0 0.0
          %1647 = vmatpush1.msra.mxu0 0.0
          %1648 = vmatprep.subr.mxu0 0.0
          %1649 = vmatpush1.msra.mxu0 0.0
          %1650 = vmatprep.subr.mxu0 0.0
          %1651 = vmatpush1.msra.mxu0 0.0
          %1652 = vmatprep.subr.mxu0 0.0
          %1653 = vmatpush1.msra.mxu0 0.0
          %1654 = vmatprep.subr.mxu0 0.0
          %1655 = vmatpush1.msra.mxu0 0.0
          %1656 = vmatprep.subr.mxu0 0.0
          %1657 = vmatpush1.msra.mxu0 0.0
          %1658 = vmatprep.subr.mxu0 0.0
          %1659 = vmatpush1.msra.mxu0 0.0
          %1660 = vmatprep.subr.mxu0 0.0
          %1661 = vmatpush1.msra.mxu0 0.0
          %1662 = vmatprep.subr.mxu0 0.0
          %1663 = vmatpush1.msra.mxu0 0.0
          %1664 = vmatprep.subr.mxu0 0.0
          %1665 = vmatpush1.msra.mxu0 0.0
          %1666 = vmatprep.subr.mxu0 0.0
          %1667 = vmatpush1.msra.mxu0 0.0
          %1668 = vmatprep.subr.mxu0 0.0
          %1669 = vmatpush1.msra.mxu0 %v1378
          %1670 = vmatprep.subr.mxu0 0.0
          %1671 = vmatpush2.msra.mxu0 0.0
          %1672 = vmatprep.subr.mxu0 0.0
          %1673 = vmatpush2.msra.mxu0 0.0
          %1674 = vmatprep.subr.mxu0 0.0
          %1675 = vmatpush2.msra.mxu0 0.0
          %1676 = vmatprep.subr.mxu0 0.0
          %1677 = vmatpush2.msra.mxu0 0.0
          %1678 = vmatprep.subr.mxu0 0.0
          %1679 = vmatpush2.msra.mxu0 0.0
          %1680 = vmatprep.subr.mxu0 0.0
          %1681 = vmatpush2.msra.mxu0 0.0
          %1682 = vmatprep.subr.mxu0 0.0
          %1683 = vmatpush2.msra.mxu0 0.0
          %1684 = vmatprep.subr.mxu0 0.0
          %1685 = vmatpush2.msra.mxu0 0.0
          %1686 = vmatprep.subr.mxu0 0.0
          %1687 = vmatpush2.msra.mxu0 0.0
          %1688 = vmatprep.subr.mxu0 0.0
          %1689 = vmatpush2.msra.mxu0 0.0
          %1690 = vmatprep.subr.mxu0 0.0
          %1691 = vmatpush2.msra.mxu0 0.0
          %1692 = vmatprep.subr.mxu0 0.0
          %1693 = vmatpush2.msra.mxu0 0.0
          %1694 = vmatprep.subr.mxu0 0.0
          %1695 = vmatpush2.msra.mxu0 0.0
          %1696 = vmatprep.subr.mxu0 0.0
          %1697 = vmatpush2.msra.mxu0 0.0
          %1698 = vmatprep.subr.mxu0 0.0
          %1699 = vmatpush2.msra.mxu0 0.0
          %1700 = vmatprep.subr.mxu0 0.0
          %1701 = vmatpush2.msra.mxu0 0.0
          %1702 = vmatprep.mubr.f32.mxu0 0.0
          %1703 = vmatmul.mubr.f32.gmra.mxu0 %v1636
          %v1704 = vpop.f32.mrf.mxu0
          %v1705 = vadd.f32 0.0, %v1704
          %v1706 = vpop.f32.mrf.mxu0
          %1707 = vdwg.mxu0
          %v1708 = vadd.f32 %v1625, %v1705
          %v1709 = vld [vmem:[%s5] sm:$0x1]
          %v1711 = vlaneseq
          %v1712 = vshrl.u32 %v1711, 7
          %v1713 = vsub.s32 0, %v1712
          %v1714 = vrot.slane %v1709, %v1713
          %v1716 = vadd.f32 %v1708, %v1714
          %v1717 = vadd.f32 %v1716, %v608
          %v1718 = vld [vmem:[%s6] sm:$0x1]
          %v1719 = vld [vmem:[%s7] sm:$0x1]
          %vm1720 = vcmask 261120
          %v1721 = vsel %vm1720, %v1717, 0.0
          %1722 = vadd.xlane.f32.xlu0 %v1721
          %v1723 = vpop.xlane.xlu0 %1722
          %v1724 = vrcp.pop 32.0
          %v1725 = vmul.f32 %v1723, %v1724
          %v1726 = vsub.f32 %v1717, %v1725
          %v1727 = vmul.f32 %v1726, %v1726
          %v1728 = vsel %vm1720, %v1727, 0.0
          %1729 = vadd.xlane.f32.xlu0 %v1728
          %v1730 = vpop.xlane.xlu0 %1729
          %v1731 = vmul.f32 %v1730, %v1724
          %v1732 = vadd.f32 %v1731, 1e-05
          %v1733 = vrsqrt.pop %v1732
          %v1734 = vmul.f32 %v1726, %v1733
          %v1736 = vlaneseq
          %v1737 = vshrl.u32 %v1736, 7
          %v1738 = vsub.s32 0, %v1737
          %v1739 = vrot.slane %v1718, %v1738
          %v1741 = vmul.f32 %v1734, %v1739
          %v1743 = vlaneseq
          %v1744 = vshrl.u32 %v1743, 7
          %v1745 = vsub.s32 0, %v1744
          %v1746 = vrot.slane %v1719, %v1745
          %v1748 = vadd.f32 %v1741, %v1746
          %v1749 = vld [vmem:[%s8] sm:$0xff]
          %v1750 = vld [vmem:[%s8 + $0x8] sm:$0xff]
          %v1751 = vld [vmem:[%s8 + $0x10] sm:$0xff]
          %v1752 = vld [vmem:[%s8 + $0x18] sm:$0xff]
          %v1753 = vld [vmem:[%s9] sm:$0x1]
          %v1755 = vlaneseq
          %v1756 = vshrl.u32 %v1755, 7
          %v1757 = vsub.s32 0, %v1756
          %v1758 = vrot.slane %v1753, %v1757
          %v1761 = vsel %vm1720, %v1748, 0
          %1763 = vmatprep.subr.mxu0 0.0
          %1764 = vmatpush1.msra.mxu0 0.0
          %1765 = vmatprep.subr.mxu0 0.0
          %1766 = vmatpush1.msra.mxu0 0.0
          %1767 = vmatprep.subr.mxu0 0.0
          %1768 = vmatpush1.msra.mxu0 0.0
          %1769 = vmatprep.subr.mxu0 0.0
          %1770 = vmatpush1.msra.mxu0 0.0
          %1771 = vmatprep.subr.mxu0 0.0
          %1772 = vmatpush1.msra.mxu0 0.0
          %1773 = vmatprep.subr.mxu0 0.0
          %1774 = vmatpush1.msra.mxu0 0.0
          %1775 = vmatprep.subr.mxu0 0.0
          %1776 = vmatpush1.msra.mxu0 0.0
          %1777 = vmatprep.subr.mxu0 0.0
          %1778 = vmatpush1.msra.mxu0 0.0
          %1779 = vmatprep.subr.mxu0 0.0
          %1780 = vmatpush1.msra.mxu0 0.0
          %1781 = vmatprep.subr.mxu0 0.0
          %1782 = vmatpush1.msra.mxu0 0.0
          %1783 = vmatprep.subr.mxu0 0.0
          %1784 = vmatpush1.msra.mxu0 0.0
          %1785 = vmatprep.subr.mxu0 0.0
          %1786 = vmatpush1.msra.mxu0 0.0
          %1787 = vmatprep.subr.mxu0 0.0
          %1788 = vmatpush1.msra.mxu0 %v1752
          %1789 = vmatprep.subr.mxu0 0.0
          %1790 = vmatpush1.msra.mxu0 %v1751
          %1791 = vmatprep.subr.mxu0 0.0
          %1792 = vmatpush1.msra.mxu0 %v1750
          %1793 = vmatprep.subr.mxu0 0.0
          %1794 = vmatpush1.msra.mxu0 %v1749
          %1795 = vmatprep.subr.mxu0 0.0
          %1796 = vmatpush2.msra.mxu0 0.0
          %1797 = vmatprep.subr.mxu0 0.0
          %1798 = vmatpush2.msra.mxu0 0.0
          %1799 = vmatprep.subr.mxu0 0.0
          %1800 = vmatpush2.msra.mxu0 0.0
          %1801 = vmatprep.subr.mxu0 0.0
          %1802 = vmatpush2.msra.mxu0 0.0
          %1803 = vmatprep.subr.mxu0 0.0
          %1804 = vmatpush2.msra.mxu0 0.0
          %1805 = vmatprep.subr.mxu0 0.0
          %1806 = vmatpush2.msra.mxu0 0.0
          %1807 = vmatprep.subr.mxu0 0.0
          %1808 = vmatpush2.msra.mxu0 0.0
          %1809 = vmatprep.subr.mxu0 0.0
          %1810 = vmatpush2.msra.mxu0 0.0
          %1811 = vmatprep.subr.mxu0 0.0
          %1812 = vmatpush2.msra.mxu0 0.0
          %1813 = vmatprep.subr.mxu0 0.0
          %1814 = vmatpush2.msra.mxu0 0.0
          %1815 = vmatprep.subr.mxu0 0.0
          %1816 = vmatpush2.msra.mxu0 0.0
          %1817 = vmatprep.subr.mxu0 0.0
          %1818 = vmatpush2.msra.mxu0 0.0
          %1819 = vmatprep.subr.mxu0 0.0
          %1820 = vmatpush2.msra.mxu0 0.0
          %1821 = vmatprep.subr.mxu0 0.0
          %1822 = vmatpush2.msra.mxu0 0.0
          %1823 = vmatprep.subr.mxu0 0.0
          %1824 = vmatpush2.msra.mxu0 0.0
          %1825 = vmatprep.subr.mxu0 0.0
          %1826 = vmatpush2.msra.mxu0 0.0
          %1827 = vmatprep.mubr.f32.mxu0 0.0
          %1828 = vmatmul.mubr.f32.gmra.mxu0 %v1761
          %v1829 = vpop.f32.mrf.mxu0
          %v1830 = vadd.f32 %v1758, %v1829
          %v1831 = vpop.f32.mrf.mxu0
          %1832 = vdwg.mxu0
          %v1833 = vmax.f32 %v1830, 0.0
          %v1834 = vld [vmem:[%s10] sm:$0xff]
          %v1835 = vld [vmem:[%s10 + $0x8] sm:$0xff]
          %v1836 = vld [vmem:[%s10 + $0x10] sm:$0xff]
          %v1837 = vld [vmem:[%s10 + $0x18] sm:$0xff]
          %v1838 = vld [vmem:[%s10 + $0x20] sm:$0xff]
          %v1839 = vld [vmem:[%s10 + $0x28] sm:$0xff]
          %v1840 = vld [vmem:[%s10 + $0x30] sm:$0xff]
          %v1841 = vld [vmem:[%s10 + $0x38] sm:$0xff]
          %v1842 = vld [vmem:[%s10 + $0x40] sm:$0xff]
          %v1843 = vld [vmem:[%s10 + $0x48] sm:$0xff]
          %v1844 = vld [vmem:[%s10 + $0x50] sm:$0xff]
          %v1845 = vld [vmem:[%s10 + $0x58] sm:$0xff]
          %v1846 = vld [vmem:[%s10 + $0x60] sm:$0xff]
          %v1847 = vld [vmem:[%s10 + $0x68] sm:$0xff]
          %v1848 = vld [vmem:[%s10 + $0x70] sm:$0xff]
          %v1849 = vld [vmem:[%s10 + $0x78] sm:$0xff]
          %v1850 = vld [vmem:[%s11] sm:$0x1]
          %v1852 = vlaneseq
          %v1853 = vshrl.u32 %v1852, 7
          %v1854 = vsub.s32 0, %v1853
          %v1855 = vrot.slane %v1850, %v1854
          %1857 = vmatprep.subr.mxu0 0.0
          %1858 = vmatpush1.msra.mxu0 %v1849
          %1859 = vmatprep.subr.mxu0 0.0
          %1860 = vmatpush1.msra.mxu0 %v1848
          %1861 = vmatprep.subr.mxu0 0.0
          %1862 = vmatpush1.msra.mxu0 %v1847
          %1863 = vmatprep.subr.mxu0 0.0
          %1864 = vmatpush1.msra.mxu0 %v1846
          %1865 = vmatprep.subr.mxu0 0.0
          %1866 = vmatpush1.msra.mxu0 %v1845
          %1867 = vmatprep.subr.mxu0 0.0
          %1868 = vmatpush1.msra.mxu0 %v1844
          %1869 = vmatprep.subr.mxu0 0.0
          %1870 = vmatpush1.msra.mxu0 %v1843
          %1871 = vmatprep.subr.mxu0 0.0
          %1872 = vmatpush1.msra.mxu0 %v1842
          %1873 = vmatprep.subr.mxu0 0.0
          %1874 = vmatpush1.msra.mxu0 %v1841
          %1875 = vmatprep.subr.mxu0 0.0
          %1876 = vmatpush1.msra.mxu0 %v1840
          %1877 = vmatprep.subr.mxu0 0.0
          %1878 = vmatpush1.msra.mxu0 %v1839
          %1879 = vmatprep.subr.mxu0 0.0
          %1880 = vmatpush1.msra.mxu0 %v1838
          %1881 = vmatprep.subr.mxu0 0.0
          %1882 = vmatpush1.msra.mxu0 %v1837
          %1883 = vmatprep.subr.mxu0 0.0
          %1884 = vmatpush1.msra.mxu0 %v1836
          %1885 = vmatprep.subr.mxu0 0.0
          %1886 = vmatpush1.msra.mxu0 %v1835
          %1887 = vmatprep.subr.mxu0 0.0
          %1888 = vmatpush1.msra.mxu0 %v1834
          %1889 = vmatprep.subr.mxu0 0.0
          %1890 = vmatpush2.msra.mxu0 0.0
          %1891 = vmatprep.subr.mxu0 0.0
          %1892 = vmatpush2.msra.mxu0 0.0
          %1893 = vmatprep.subr.mxu0 0.0
          %1894 = vmatpush2.msra.mxu0 0.0
          %1895 = vmatprep.subr.mxu0 0.0
          %1896 = vmatpush2.msra.mxu0 0.0
          %1897 = vmatprep.subr.mxu0 0.0
          %1898 = vmatpush2.msra.mxu0 0.0
          %1899 = vmatprep.subr.mxu0 0.0
          %1900 = vmatpush2.msra.mxu0 0.0
          %1901 = vmatprep.subr.mxu0 0.0
          %1902 = vmatpush2.msra.mxu0 0.0
          %1903 = vmatprep.subr.mxu0 0.0
          %1904 = vmatpush2.msra.mxu0 0.0
          %1905 = vmatprep.subr.mxu0 0.0
          %1906 = vmatpush2.msra.mxu0 0.0
          %1907 = vmatprep.subr.mxu0 0.0
          %1908 = vmatpush2.msra.mxu0 0.0
          %1909 = vmatprep.subr.mxu0 0.0
          %1910 = vmatpush2.msra.mxu0 0.0
          %1911 = vmatprep.subr.mxu0 0.0
          %1912 = vmatpush2.msra.mxu0 0.0
          %1913 = vmatprep.subr.mxu0 0.0
          %1914 = vmatpush2.msra.mxu0 0.0
          %1915 = vmatprep.subr.mxu0 0.0
          %1916 = vmatpush2.msra.mxu0 0.0
          %1917 = vmatprep.subr.mxu0 0.0
          %1918 = vmatpush2.msra.mxu0 0.0
          %1919 = vmatprep.subr.mxu0 0.0
          %1920 = vmatpush2.msra.mxu0 0.0
          %1921 = vmatprep.mubr.f32.mxu0 0.0
          %1922 = vmatmul.mubr.f32.gmra.mxu0 %v1833
          %v1923 = vpop.f32.mrf.mxu0
          %v1924 = vadd.f32 %v1855, %v1923
          %v1925 = vpop.f32.mrf.mxu0
          %1926 = vdwg.mxu0
          %v1927 = vadd.f32 %v1924, %v1748
          %v1928 = vld [vmem:[%s12] sm:$0x1]
          %v1929 = vld [vmem:[%s13] sm:$0x1]
          %v1930 = vsel %vm1720, %v1927, 0.0
          %1931 = vadd.xlane.f32.xlu0 %v1930
          %v1932 = vpop.xlane.xlu0 %1931
          %v1933 = vmul.f32 %v1932, %v1724
          %v1934 = vsub.f32 %v1927, %v1933
          %v1935 = vmul.f32 %v1934, %v1934
          %v1936 = vsel %vm1720, %v1935, 0.0
          %1937 = vadd.xlane.f32.xlu0 %v1936
          %v1938 = vpop.xlane.xlu0 %1937
          %v1939 = vmul.f32 %v1938, %v1724
          %v1940 = vadd.f32 %v1939, 1e-05
          %v1941 = vrsqrt.pop %v1940
          %v1942 = vmul.f32 %v1934, %v1941
          %v1944 = vlaneseq
          %v1945 = vshrl.u32 %v1944, 7
          %v1946 = vsub.s32 0, %v1945
          %v1947 = vrot.slane %v1928, %v1946
          %v1949 = vmul.f32 %v1942, %v1947
          %v1951 = vlaneseq
          %v1952 = vshrl.u32 %v1951, 7
          %v1953 = vsub.s32 0, %v1952
          %v1954 = vrot.slane %v1929, %v1953
          %v1956 = vadd.f32 %v1949, %v1954
          %1957 = vst.msk [vmem:[%s558] sm:$0xff] %vm1720, %v1956
        $region84: #{tpu_custom_call.1} parent=75 // pred_fallthru
          _
        %s1958 = sand.u32 %s381, 1
        %s1959 = scalar_lea.sflag [#allocation6], %s1958
        %s1960 = sand.u32 %s381, 1
        %s1961 = smul.addr %s1960, 8
        %s1962 = scalar_lea.vmem [#allocation5], %s1961
        // Predicated region
        $region85: #{tpu_custom_call.1} parent=75 // pred_check
          %p1963 = pneg %p391
        $region86: #{tpu_custom_call.1} parent=75 // pred_check_branch
          %1965 = sbr.rel (%p1963) target = $region88
        $region87: #{tpu_custom_call.1} parent=75 // pred_region
          %s1967 = ssub.s32 128, 128
          %1968 = vsyncadd %s1959, %s1967
          %s1969 = sadd.s32 %s34, %s33
          %s1970 = smul.addr %s1969, 128
          %s1971 = scalar_lea.hbm %s14, %s1970
          %s1973 = sshll.u32 %s1962, 4
          %s1974 = int_to_ptr.vmem [resolvable:$true] %s1973
          %1976 = dma.vmem_to_hbm [thread:$0]  %s1974, 128, %s1971, %s1959
        $region88: #{tpu_custom_call.1} parent=75 // pred_fallthru
          _
      $region76: #{tpu_custom_call.1} parent=5 // pred_fallthru
        _
      %p1977 = scmp.le.s32.totalorder 2, %s23
      // Predicated region
      $region89: #{tpu_custom_call.1} parent=5 // pred_check
        %p1978 = pneg %p1977
      $region90: #{tpu_custom_call.1} parent=5 // pred_check_branch
        %1980 = sbr.rel (%p1978) target = $region92
      $region91: #{tpu_custom_call.1} parent=5 // pred_region
        %s1981 = ssub.s32 %s23, 2
        // Predicated region
        $region93: #{tpu_custom_call.1} parent=91 // pred_check
          %p1982 = pneg %p397
        $region94: #{tpu_custom_call.1} parent=91 // pred_check_branch
          %1984 = sbr.rel (%p1982) target = $region96
        $region95: #{tpu_custom_call.1} parent=91 // pred_region
          %s1985 = sand.u32 %s382, 1
          %s1986 = scalar_lea.sflag [#allocation6], %s1985
          %s1987 = sand.u32 %s382, 1
          %s1988 = smul.addr %s1987, 8
          %s1989 = scalar_lea.vmem [#allocation5], %s1988
          %1990 = dma.done %s1986, 128
        $region96: #{tpu_custom_call.1} parent=91 // pred_fallthru
          _
      $region92: #{tpu_custom_call.1} parent=5 // pred_fallthru
        _
    $region6: #{tpu_custom_call.1} parent=1 // loop_footer
      %s27 = sadd.s32 1, %s23
    $region7: #{tpu_custom_call.1} parent=1 // loop_footer_branch
      %22 = sbr.rel target = $region3
    $region8: #{tpu_custom_call.1} parent=1 // loop_exit
      _
    %1991 = vsyncpa [#allocation6], 1
    %s1992 = scalar_lea.sflag [#allocation6], 1
    %1993 = vsyncpa %s1992, 1

</llo_original>
